<compile_context>
chip_gen: v6e
topology: v6e:2x2x1
jax: 0.10.0
libtpu: 0.0.40
codegen_flags: <defaults>
</compile_context>

<pallas_src>
import jax
import jax.numpy as jnp
from jax import lax
from jax.experimental import pallas as pl
from jax.experimental.pallas import tpu as pltpu

N = 16              # number of graph nodes
C = 32              # out_channels
F_IN = 4 * C        # 128: input feature dim  (out_channels * 4)
F_MID = 2 * C       # 64 : layer-2 output dim (heads=2 * out_channels)
LANE = 128          # one lane-aligned projection slot
PROJ_W = 4 * LANE   # 512: q | k | v | skip slots
EPS = 1e-5          # GraphNorm eps

# parameter-slab row layout (all sections 16-row aligned for bf16 sublane tiling)
MISC_ROW = 3 * F_IN            # 384: start of bias / GraphNorm block (16 rows)
WH_ROW = MISC_ROW + 16         # 400: start of padded layer-3 weight block (256 rows)
SLAB_ROWS = WH_ROW + 2 * LANE  # 656


# ----------------------------- in-kernel helpers ---------------------------------------

def _softplus(x):
    # numerically safe softplus (avoids exp overflow)
    return jnp.where(x > 20.0, x, jnp.log1p(jnp.exp(jnp.minimum(x, 20.0))))


def _mish(x):
    return x * jnp.tanh(_softplus(x))


# ----------------------------------- kernel --------------------------------------------

def gcn_encoder_kernel(x_ref, adj_ref, p_ref, out_ref):
    x = x_ref[...].astype(jnp.bfloat16)                 # [N, 128]
    adj = adj_ref[...]                                  # [N, N] f32, adj[dst, src]

    # bias / GraphNorm block (one aligned [16, 512] load, sliced in-register)
    misc = p_ref[MISC_ROW:WH_ROW, :].astype(jnp.float32)
    bxa, bxb, bxc, bh = misc[0:1], misc[1:2], misc[2:3], misc[3:4]
    gn_w = misc[4:5, 0:2 * LANE]
    gn_b = misc[5:6, 0:2 * LANE]
    gn_ms = misc[6:7, 0:2 * LANE]

    # fused x-side projections: layer-2 head0, layer-2 head1, layer-4.
    # bf16 MXU matmuls with f32 accumulation; every q/k/v/skip lands on a 128-lane slot.
    pa = jnp.dot(x, p_ref[0:F_IN, :], preferred_element_type=jnp.float32) + bxa
    pb = jnp.dot(x, p_ref[F_IN:2 * F_IN, :], preferred_element_type=jnp.float32) + bxb
    pc = jnp.dot(x, p_ref[2 * F_IN:3 * F_IN, :], preferred_element_type=jnp.float32) + bxc

    def conv_head(proj):
        """One TransformerConv head on a [N, 512] projected block (q|k|v|skip slots).

        Real data lives in the first C lanes of each slot; pad lanes are exactly zero, so
        they do not perturb the contractions and the result's pad lanes stay zero.
        The 1/sqrt(C) scale is pre-folded into the q slot. Masking is done once via `* adj`
        after exp; the row max over all columns is a valid softmax stabilizer (shift
        invariance), and zero-in-degree rows come out as all-zero attention (PyG semantics).
        """
        q, k = proj[:, 0:LANE], proj[:, LANE:2 * LANE]
        v, skip = proj[:, 2 * LANE:3 * LANE], proj[:, 3 * LANE:4 * LANE]
        s = lax.dot_general(q, k, (((1,), (1,)), ((), ())),
                            preferred_element_type=jnp.float32)          # [N, N]
        e = jnp.exp(s - jnp.max(s, axis=-1, keepdims=True)) * adj
        inv = pl.reciprocal(jnp.maximum(jnp.sum(e, axis=-1, keepdims=True), 1e-16),
                            approx=True)
        return jnp.dot(e * inv, v, preferred_element_type=jnp.float32) + skip

    # ---- layer 2: TransformerConv(4C -> C, heads=2, concat) + root/skip term.
    # Heads concatenated at a 128-lane boundary -> h stays head-padded [N, 256].
    h = jnp.concatenate([conv_head(pa), conv_head(pb)], axis=-1)

    # ---- GraphNorm(2C) + Mish on the head-padded layout (pad lanes are exactly zero and
    #      stay zero: gn pad entries are zero and the padded w_h rows below are zero too).
    mean = jnp.mean(h, axis=0, keepdims=True)
    hc = h - gn_ms * mean
    var = jnp.mean(hc * hc, axis=0, keepdims=True)
    h = gn_w * hc * lax.rsqrt(var + EPS) + gn_b
    h = _mish(h)

    # ---- layer 3: fused projections from h (one bf16 matmul over the padded 256-dim
    #      contraction; pad rows of the weight slab are zero), then single-head attention.
    ph = jnp.dot(h.astype(jnp.bfloat16), p_ref[WH_ROW:SLAB_ROWS, :],
                 preferred_element_type=jnp.float32) + bh
    h3 = conv_head(ph)

    # ---- layer 4: single-head attention on the raw-input projections (independent of the
    #      layer-2 -> GN -> Mish -> layer-3 chain; free filler for the scheduler).
    h4 = conv_head(pc)

    out_ref[...] = (h3 + h4)[:, 0:C]                    # (N, C) direct store


# --------------------------------- host wrapper -----------------------------------------

@jax.jit
def gcn_encoder_forward(x, adj, slab):
    vmem = pl.BlockSpec(memory_space=pltpu.MemorySpace.VMEM)
    flops = (3 * 2 * N * F_IN * PROJ_W          # x-side projections
             + 2 * N * (2 * LANE) * PROJ_W      # layer-3 projections
             + 4 * (2 * N * LANE * N + 2 * N * N * LANE))   # 4 attention heads
    transcendentals = 4 * N * N + 3 * N * 2 * LANE + 2 * LANE + 4 * N
    bytes_accessed = x.size * 4 + adj.size * 4 + slab.size * 2 + N * C * 4
    return pl.pallas_call(
        gcn_encoder_kernel,
        out_shape=jax.ShapeDtypeStruct((N, C), jnp.float32),
        in_specs=[vmem, vmem, vmem],
        out_specs=vmem,
        cost_estimate=pl.CostEstimate(flops=flops, transcendentals=transcendentals,
                                      bytes_accessed=bytes_accessed),
    )(x, adj, slab)


def init_params(key):
    weight_shapes = [
        ("wq2", (F_IN, F_MID)), ("wk2", (F_IN, F_MID)),
        ("wv2", (F_IN, F_MID)), ("ws2", (F_IN, F_MID)),
        ("wq3", (F_MID, C)), ("wk3", (F_MID, C)),
        ("wv3", (F_MID, C)), ("ws3", (F_MID, C)),
        ("wq4", (F_IN, C)), ("wk4", (F_IN, C)),
        ("wv4", (F_IN, C)), ("ws4", (F_IN, C)),
    ]
    bias_shapes = [("bq2", F_MID), ("bk2", F_MID), ("bv2", F_MID), ("bs2", F_MID),
                   ("bq3", C), ("bk3", C), ("bv3", C), ("bs3", C),
                   ("bq4", C), ("bk4", C), ("bv4", C), ("bs4", C), ("gn_b", F_MID)]
    keys = jax.random.split(key, len(weight_shapes) + len(bias_shapes) + 2)
    params = {name: 0.1 * jax.random.normal(k, shape, jnp.float32)
              for (name, shape), k in zip(weight_shapes, keys)}
    for (name, dim), k in zip(bias_shapes, keys[len(weight_shapes):]):
        params[name] = 0.05 * jax.random.normal(k, (1, dim), jnp.float32)
    params["gn_w"] = 1.0 + 0.1 * jax.random.normal(keys[-2], (1, F_MID), jnp.float32)
    params["gn_ms"] = 1.0 + 0.1 * jax.random.normal(keys[-1], (1, F_MID), jnp.float32)
    return params


def pack_params(p, dtype=jnp.bfloat16):
    """Pack all 27 per-layer tensors into ONE lane-aligned bf16 slab [656, 512].

    Rows 0:384   : x-side projection weights, 3 chunks of 128 rows
                   (layer-2 head0, layer-2 head1, layer-4), 4 slots of 128 lanes each
                   (q | k | v | skip), real data in the first 32 lanes of each slot.
    Rows 384:400 : biases (3 x-chunks + layer-3) and GraphNorm weight/bias/mean_scale.
    Rows 400:656 : layer-3 weights on the head-padded 256-dim contraction (real rows
                   0:32 and 128:160), 4 slots of 128 lanes.
    The 1/sqrt(C) attention scale is folded into every wq/bq here.
    """
    scale = 1.0 / (C ** 0.5)

    def slot_x(w):                     # [F_IN, c<=128] -> [F_IN, 128]
        return jnp.zeros((F_IN, LANE), jnp.float32).at[:, : w.shape[1]].set(w)

    def slot_b(b):                     # [1, c<=128] -> [1, 128]
        return jnp.zeros((1, LANE), jnp.float32).at[:, : b.shape[1]].set(b)

    def slot_h(w):                     # [F_MID, C] -> [256, 128], head-padded rows
        out = jnp.zeros((2 * LANE, LANE), jnp.float32)
        out = out.at[0:C, 0:C].set(w[0:C])
        out = out.at[LANE:LANE + C, 0:C].set(w[C:])
        return out

    def pad_gn(g):                     # [1, F_MID] -> [1, 256], head-padded lanes
        out = jnp.zeros((1, 2 * LANE), jnp.float32)
        out = out.at[:, 0:C].set(g[:, 0:C])
        out = out.at[:, LANE:LANE + C].set(g[:, C:])
        return out

    chunk_a = jnp.concatenate([slot_x(p["wq2"][:, :C] * scale), slot_x(p["wk2"][:, :C]),
                               slot_x(p["wv2"][:, :C]), slot_x(p["ws2"][:, :C])], axis=1)
    chunk_b = jnp.concatenate([slot_x(p["wq2"][:, C:] * scale), slot_x(p["wk2"][:, C:]),
                               slot_x(p["wv2"][:, C:]), slot_x(p["ws2"][:, C:])], axis=1)
    chunk_c = jnp.concatenate([slot_x(p["wq4"] * scale), slot_x(p["wk4"]),
                               slot_x(p["wv4"]), slot_x(p["ws4"])], axis=1)

    bxa = jnp.concatenate([slot_b(p["bq2"][:, :C] * scale), slot_b(p["bk2"][:, :C]),
                           slot_b(p["bv2"][:, :C]), slot_b(p["bs2"][:, :C])], axis=1)
    bxb = jnp.concatenate([slot_b(p["bq2"][:, C:] * scale), slot_b(p["bk2"][:, C:]),
                           slot_b(p["bv2"][:, C:]), slot_b(p["bs2"][:, C:])], axis=1)
    bxc = jnp.concatenate([slot_b(p["bq4"] * scale), slot_b(p["bk4"]),
                           slot_b(p["bv4"]), slot_b(p["bs4"])], axis=1)
    bh = jnp.concatenate([slot_b(p["bq3"] * scale), slot_b(p["bk3"]),
                          slot_b(p["bv3"]), slot_b(p["bs3"])], axis=1)

    misc = jnp.zeros((16, PROJ_W), jnp.float32)
    misc = misc.at[0:1].set(bxa).at[1:2].set(bxb).at[2:3].set(bxc).at[3:4].set(bh)
    misc = misc.at[4:5, 0:2 * LANE].set(pad_gn(p["gn_w"]))
    misc = misc.at[5:6, 0:2 * LANE].set(pad_gn(p["gn_b"]))
    misc = misc.at[6:7, 0:2 * LANE].set(pad_gn(p["gn_ms"]))

    wh = jnp.concatenate([slot_h(p["wq3"] * scale), slot_h(p["wk3"]),
                          slot_h(p["wv3"]), slot_h(p["ws3"])], axis=1)      # [256, 512]

    slab = jnp.concatenate([chunk_a, chunk_b, chunk_c, misc, wh], axis=0)   # [656, 512]
    assert slab.shape == (SLAB_ROWS, PROJ_W)
    return slab.astype(dtype)


# --------------------------- pure-JAX reference (for checking) --------------------------

def _ref_conv(x, adj, p, tag, heads):
    hp = lax.Precision.HIGHEST
    q = jnp.dot(x, p["wq" + tag], precision=hp) + p["bq" + tag]
    k = jnp.dot(x, p["wk" + tag], precision=hp) + p["bk" + tag]
    v = jnp.dot(x, p["wv" + tag], precision=hp) + p["bv" + tag]
    outs = []
    for h in range(heads):
        qh, kh, vh = (t[:, h * C:(h + 1) * C] for t in (q, k, v))
        s = jnp.dot(qh, kh.T, precision=hp) / (C ** 0.5)
        s = jnp.where(adj > 0.0, s, -1e30)
        e = jnp.exp(s - s.max(-1, keepdims=True)) * adj
        a = e / jnp.maximum(e.sum(-1, keepdims=True), 1e-16)
        outs.append(jnp.dot(a, vh, precision=hp))
    out = outs[0] if heads == 1 else jnp.concatenate(outs, axis=-1)
    return out + jnp.dot(x, p["ws" + tag], precision=hp) + p["bs" + tag]


def reference_forward(x, adj, p):
    h = _ref_conv(x, adj, p, "2", 2)
    mean = h.mean(0, keepdims=True)
    hc = h - p["gn_ms"] * mean
    var = (hc * hc).mean(0, keepdims=True)
    h = p["gn_w"] * hc / jnp.sqrt(var + EPS) + p["gn_b"]
    h = h * jnp.tanh(jax.nn.softplus(h))          # Mish
    return _ref_conv(h, adj, p, "3", 1) + _ref_conv(x, adj, p, "4", 1)


# ------------------------------------- main ---------------------------------------------

if __name__ == "__main__":
    key = jax.random.PRNGKey(0)
    kx, kp = jax.random.split(key)

    # node features: [N, 4*out_channels]
    x = jax.random.normal(kx, (N, F_IN), jnp.float32)

    # deterministic edge_index [2, E] (row 0 = src, row 1 = dst): ring + skip-2 edges,
    # every node has at least one incoming edge.
    idx = jnp.arange(N)
    src = jnp.concatenate([idx, (idx + 2) % N])
    dst = jnp.concatenate([(idx + 1) % N, idx])
    edge_index = jnp.stack([src, dst])  # [2, 2N]

    # glue: dense adjacency mask adj[dst, src] = 1.0
    adj = jnp.zeros((N, N), jnp.float32).at[edge_index[1], edge_index[0]].set(1.0)

    params = init_params(kp)
    slab = pack_params(params)          # single bf16 parameter slab [656, 512]

    out = gcn_encoder_forward(x, adj, slab)
    jax.block_until_ready(out)

    assert out.shape == (N, C) and out.dtype == jnp.float32
    assert bool(jnp.all(jnp.isfinite(out)))

    ref = reference_forward(x, adj, params)
    max_err = float(jnp.max(jnp.abs(out - ref)))
    assert max_err < 5e-2, f"kernel/reference mismatch: {max_err}"
    print("KERNEL_OK")
</pallas_src>

<mosaic_0001>
module attributes {stable_mosaic.version = 11 : i64} {
  func.func @gcn_encoder_kernel(%arg0: memref<16x128xf32, #tpu.memory_space<vmem>>, %arg1: memref<16x16xf32, #tpu.memory_space<vmem>>, %arg2: memref<656x512xbf16, #tpu.memory_space<vmem>>, %arg3: memref<16x32xf32, #tpu.memory_space<vmem>>) attributes {dimension_semantics = [], scalar_prefetch = 0 : i64, scratch_operands = 0 : i64, tpu.core_type = #tpu.core_type<tc>} {
    %c0 = arith.constant 0 : index
    %c0_0 = arith.constant 0 : index
    %0 = vector.load %arg0[%c0, %c0_0] : memref<16x128xf32, #tpu.memory_space<vmem>>, vector<16x128xf32>
    %1 = arith.truncf %0 : vector<16x128xf32> to vector<16x128xbf16>
    %c0_1 = arith.constant 0 : index
    %c0_2 = arith.constant 0 : index
    %2 = vector.load %arg1[%c0_1, %c0_2] : memref<16x16xf32, #tpu.memory_space<vmem>>, vector<16x16xf32>
    %c384 = arith.constant 384 : index
    %c0_3 = arith.constant 0 : index
    %3 = vector.load %arg2[%c384, %c0_3] : memref<656x512xbf16, #tpu.memory_space<vmem>>, vector<16x512xbf16>
    %4 = arith.extf %3 : vector<16x512xbf16> to vector<16x512xf32>
    %5 = vector.extract_strided_slice %4 {offsets = [0, 0], sizes = [1, 512], strides = [1, 1]} : vector<16x512xf32> to vector<1x512xf32>
    %6 = vector.extract_strided_slice %4 {offsets = [1, 0], sizes = [1, 512], strides = [1, 1]} : vector<16x512xf32> to vector<1x512xf32>
    %7 = vector.extract_strided_slice %4 {offsets = [2, 0], sizes = [1, 512], strides = [1, 1]} : vector<16x512xf32> to vector<1x512xf32>
    %8 = vector.extract_strided_slice %4 {offsets = [3, 0], sizes = [1, 512], strides = [1, 1]} : vector<16x512xf32> to vector<1x512xf32>
    %9 = vector.extract_strided_slice %4 {offsets = [4, 0], sizes = [1, 256], strides = [1, 1]} : vector<16x512xf32> to vector<1x256xf32>
    %10 = vector.extract_strided_slice %4 {offsets = [5, 0], sizes = [1, 256], strides = [1, 1]} : vector<16x512xf32> to vector<1x256xf32>
    %11 = vector.extract_strided_slice %4 {offsets = [6, 0], sizes = [1, 256], strides = [1, 1]} : vector<16x512xf32> to vector<1x256xf32>
    %c0_4 = arith.constant 0 : index
    %c0_5 = arith.constant 0 : index
    %12 = vector.load %arg2[%c0_4, %c0_5] : memref<656x512xbf16, #tpu.memory_space<vmem>>, vector<128x512xbf16>
    %cst = arith.constant dense<0.000000e+00> : vector<16x512xf32>
    %13 = tpu.matmul %1, %12, %cst {dimension_numbers = #tpu.dot_dimension_numbers<[1], [0], [0], [1], [0, 0, 1, 1], [], []>} : vector<16x128xbf16>, vector<128x512xbf16>, vector<16x512xf32> -> vector<16x512xf32>
    %14 = vector.broadcast %5 : vector<1x512xf32> to vector<16x512xf32>
    %15 = arith.addf %13, %14 : vector<16x512xf32>
    %c128 = arith.constant 128 : index
    %c0_6 = arith.constant 0 : index
    %16 = vector.load %arg2[%c128, %c0_6] : memref<656x512xbf16, #tpu.memory_space<vmem>>, vector<128x512xbf16>
    %cst_7 = arith.constant dense<0.000000e+00> : vector<16x512xf32>
    %17 = tpu.matmul %1, %16, %cst_7 {dimension_numbers = #tpu.dot_dimension_numbers<[1], [0], [0], [1], [0, 0, 1, 1], [], []>} : vector<16x128xbf16>, vector<128x512xbf16>, vector<16x512xf32> -> vector<16x512xf32>
    %18 = vector.broadcast %6 : vector<1x512xf32> to vector<16x512xf32>
    %19 = arith.addf %17, %18 : vector<16x512xf32>
    %c256 = arith.constant 256 : index
    %c0_8 = arith.constant 0 : index
    %20 = vector.load %arg2[%c256, %c0_8] : memref<656x512xbf16, #tpu.memory_space<vmem>>, vector<128x512xbf16>
    %cst_9 = arith.constant dense<0.000000e+00> : vector<16x512xf32>
    %21 = tpu.matmul %1, %20, %cst_9 {dimension_numbers = #tpu.dot_dimension_numbers<[1], [0], [0], [1], [0, 0, 1, 1], [], []>} : vector<16x128xbf16>, vector<128x512xbf16>, vector<16x512xf32> -> vector<16x512xf32>
    %22 = vector.broadcast %7 : vector<1x512xf32> to vector<16x512xf32>
    %23 = arith.addf %21, %22 : vector<16x512xf32>
    %24 = vector.extract_strided_slice %15 {offsets = [0, 0], sizes = [16, 128], strides = [1, 1]} : vector<16x512xf32> to vector<16x128xf32>
    %25 = vector.extract_strided_slice %15 {offsets = [0, 128], sizes = [16, 128], strides = [1, 1]} : vector<16x512xf32> to vector<16x128xf32>
    %26 = vector.extract_strided_slice %15 {offsets = [0, 256], sizes = [16, 128], strides = [1, 1]} : vector<16x512xf32> to vector<16x128xf32>
    %27 = vector.extract_strided_slice %15 {offsets = [0, 384], sizes = [16, 128], strides = [1, 1]} : vector<16x512xf32> to vector<16x128xf32>
    %cst_10 = arith.constant dense<0.000000e+00> : vector<16x16xf32>
    %28 = tpu.matmul %24, %25, %cst_10 {dimension_numbers = #tpu.dot_dimension_numbers<[1], [1], [0], [0], [0, 0, 1, 0], [], []>} : vector<16x128xf32>, vector<16x128xf32>, vector<16x16xf32> -> vector<16x16xf32>
    %cst_11 = arith.constant dense<0xFF800000> : vector<16xf32>
    %29 = vector.multi_reduction <maximumf>, %28, %cst_11 [1] : vector<16x16xf32> to vector<16xf32>
    %30 = vector.shape_cast %29 : vector<16xf32> to vector<16x1xf32>
    %31 = vector.broadcast %30 : vector<16x1xf32> to vector<16x16xf32>
    %32 = arith.subf %28, %31 : vector<16x16xf32>
    %33 = math.exp %32 : vector<16x16xf32>
    %34 = arith.mulf %33, %2 : vector<16x16xf32>
    %cst_12 = arith.constant dense<0.000000e+00> : vector<16xf32>
    %35 = vector.multi_reduction <add>, %34, %cst_12 [1] : vector<16x16xf32> to vector<16xf32>
    %36 = vector.shape_cast %35 : vector<16xf32> to vector<16x1xf32>
    %cst_13 = arith.constant 1.000000e-16 : f32
    %37 = vector.broadcast %cst_13 : f32 to vector<16x1xf32>
    %38 = arith.maximumf %36, %37 : vector<16x1xf32>
    %39 = tpu.reciprocal %38 {approx = true} : vector<16x1xf32> -> vector<16x1xf32>
    %40 = vector.broadcast %39 : vector<16x1xf32> to vector<16x16xf32>
    %41 = arith.mulf %34, %40 : vector<16x16xf32>
    %cst_14 = arith.constant dense<0.000000e+00> : vector<16x128xf32>
    %42 = tpu.matmul %41, %26, %cst_14 {dimension_numbers = #tpu.dot_dimension_numbers<[1], [0], [0], [1], [0, 0, 1, 1], [], []>} : vector<16x16xf32>, vector<16x128xf32>, vector<16x128xf32> -> vector<16x128xf32>
    %43 = arith.addf %42, %27 : vector<16x128xf32>
    %44 = vector.extract_strided_slice %19 {offsets = [0, 0], sizes = [16, 128], strides = [1, 1]} : vector<16x512xf32> to vector<16x128xf32>
    %45 = vector.extract_strided_slice %19 {offsets = [0, 128], sizes = [16, 128], strides = [1, 1]} : vector<16x512xf32> to vector<16x128xf32>
    %46 = vector.extract_strided_slice %19 {offsets = [0, 256], sizes = [16, 128], strides = [1, 1]} : vector<16x512xf32> to vector<16x128xf32>
    %47 = vector.extract_strided_slice %19 {offsets = [0, 384], sizes = [16, 128], strides = [1, 1]} : vector<16x512xf32> to vector<16x128xf32>
    %cst_15 = arith.constant dense<0.000000e+00> : vector<16x16xf32>
    %48 = tpu.matmul %44, %45, %cst_15 {dimension_numbers = #tpu.dot_dimension_numbers<[1], [1], [0], [0], [0, 0, 1, 0], [], []>} : vector<16x128xf32>, vector<16x128xf32>, vector<16x16xf32> -> vector<16x16xf32>
    %cst_16 = arith.constant dense<0xFF800000> : vector<16xf32>
    %49 = vector.multi_reduction <maximumf>, %48, %cst_16 [1] : vector<16x16xf32> to vector<16xf32>
    %50 = vector.shape_cast %49 : vector<16xf32> to vector<16x1xf32>
    %51 = vector.broadcast %50 : vector<16x1xf32> to vector<16x16xf32>
    %52 = arith.subf %48, %51 : vector<16x16xf32>
    %53 = math.exp %52 : vector<16x16xf32>
    %54 = arith.mulf %53, %2 : vector<16x16xf32>
    %cst_17 = arith.constant dense<0.000000e+00> : vector<16xf32>
    %55 = vector.multi_reduction <add>, %54, %cst_17 [1] : vector<16x16xf32> to vector<16xf32>
    %56 = vector.shape_cast %55 : vector<16xf32> to vector<16x1xf32>
    %cst_18 = arith.constant 1.000000e-16 : f32
    %57 = vector.broadcast %cst_18 : f32 to vector<16x1xf32>
    %58 = arith.maximumf %56, %57 : vector<16x1xf32>
    %59 = tpu.reciprocal %58 {approx = true} : vector<16x1xf32> -> vector<16x1xf32>
    %60 = vector.broadcast %59 : vector<16x1xf32> to vector<16x16xf32>
    %61 = arith.mulf %54, %60 : vector<16x16xf32>
    %cst_19 = arith.constant dense<0.000000e+00> : vector<16x128xf32>
    %62 = tpu.matmul %61, %46, %cst_19 {dimension_numbers = #tpu.dot_dimension_numbers<[1], [0], [0], [1], [0, 0, 1, 1], [], []>} : vector<16x16xf32>, vector<16x128xf32>, vector<16x128xf32> -> vector<16x128xf32>
    %63 = arith.addf %62, %47 : vector<16x128xf32>
    %64 = tpu.concatenate %43, %63 in 1 : vector<16x128xf32>, vector<16x128xf32> -> vector<16x256xf32>
    %cst_20 = arith.constant dense<0.000000e+00> : vector<256xf32>
    %65 = vector.multi_reduction <add>, %64, %cst_20 [0] : vector<16x256xf32> to vector<256xf32>
    %66 = vector.shape_cast %65 : vector<256xf32> to vector<1x256xf32>
    %cst_21 = arith.constant 1.600000e+01 : f32
    %67 = vector.broadcast %cst_21 : f32 to vector<1x256xf32>
    %68 = arith.divf %66, %67 : vector<1x256xf32>
    %69 = arith.mulf %11, %68 : vector<1x256xf32>
    %70 = vector.broadcast %69 : vector<1x256xf32> to vector<16x256xf32>
    %71 = arith.subf %64, %70 : vector<16x256xf32>
    %72 = arith.mulf %71, %71 : vector<16x256xf32>
    %cst_22 = arith.constant dense<0.000000e+00> : vector<256xf32>
    %73 = vector.multi_reduction <add>, %72, %cst_22 [0] : vector<16x256xf32> to vector<256xf32>
    %74 = vector.shape_cast %73 : vector<256xf32> to vector<1x256xf32>
    %cst_23 = arith.constant 1.600000e+01 : f32
    %75 = vector.broadcast %cst_23 : f32 to vector<1x256xf32>
    %76 = arith.divf %74, %75 : vector<1x256xf32>
    %77 = vector.broadcast %9 : vector<1x256xf32> to vector<16x256xf32>
    %78 = arith.mulf %77, %71 : vector<16x256xf32>
    %cst_24 = arith.constant 9.99999974E-6 : f32
    %79 = vector.broadcast %cst_24 : f32 to vector<1x256xf32>
    %80 = arith.addf %76, %79 : vector<1x256xf32>
    %81 = math.rsqrt %80 : vector<1x256xf32>
    %82 = vector.broadcast %81 : vector<1x256xf32> to vector<16x256xf32>
    %83 = arith.mulf %78, %82 : vector<16x256xf32>
    %84 = vector.broadcast %10 : vector<1x256xf32> to vector<16x256xf32>
    %85 = arith.addf %83, %84 : vector<16x256xf32>
    %cst_25 = arith.constant 2.000000e+01 : f32
    %86 = vector.broadcast %cst_25 : f32 to vector<16x256xf32>
    %87 = arith.cmpf ogt, %85, %86 : vector<16x256xf32>
    %cst_26 = arith.constant 2.000000e+01 : f32
    %88 = vector.broadcast %cst_26 : f32 to vector<16x256xf32>
    %89 = arith.minimumf %85, %88 : vector<16x256xf32>
    %90 = math.exp %89 : vector<16x256xf32>
    %91 = math.log1p %90 : vector<16x256xf32>
    %92 = arith.select %87, %85, %91 : vector<16x256xi1>, vector<16x256xf32>
    %93 = math.tanh %92 : vector<16x256xf32>
    %94 = arith.mulf %85, %93 : vector<16x256xf32>
    %95 = arith.truncf %94 : vector<16x256xf32> to vector<16x256xbf16>
    %c400 = arith.constant 400 : index
    %c0_27 = arith.constant 0 : index
    %96 = vector.load %arg2[%c400, %c0_27] : memref<656x512xbf16, #tpu.memory_space<vmem>>, vector<256x512xbf16>
    %cst_28 = arith.constant dense<0.000000e+00> : vector<16x512xf32>
    %97 = tpu.matmul %95, %96, %cst_28 {dimension_numbers = #tpu.dot_dimension_numbers<[1], [0], [0], [1], [0, 0, 1, 1], [], []>} : vector<16x256xbf16>, vector<256x512xbf16>, vector<16x512xf32> -> vector<16x512xf32>
    %98 = vector.broadcast %8 : vector<1x512xf32> to vector<16x512xf32>
    %99 = arith.addf %97, %98 : vector<16x512xf32>
    %100 = vector.extract_strided_slice %99 {offsets = [0, 0], sizes = [16, 128], strides = [1, 1]} : vector<16x512xf32> to vector<16x128xf32>
    %101 = vector.extract_strided_slice %99 {offsets = [0, 128], sizes = [16, 128], strides = [1, 1]} : vector<16x512xf32> to vector<16x128xf32>
    %102 = vector.extract_strided_slice %99 {offsets = [0, 256], sizes = [16, 128], strides = [1, 1]} : vector<16x512xf32> to vector<16x128xf32>
    %103 = vector.extract_strided_slice %99 {offsets = [0, 384], sizes = [16, 128], strides = [1, 1]} : vector<16x512xf32> to vector<16x128xf32>
    %cst_29 = arith.constant dense<0.000000e+00> : vector<16x16xf32>
    %104 = tpu.matmul %100, %101, %cst_29 {dimension_numbers = #tpu.dot_dimension_numbers<[1], [1], [0], [0], [0, 0, 1, 0], [], []>} : vector<16x128xf32>, vector<16x128xf32>, vector<16x16xf32> -> vector<16x16xf32>
    %cst_30 = arith.constant dense<0xFF800000> : vector<16xf32>
    %105 = vector.multi_reduction <maximumf>, %104, %cst_30 [1] : vector<16x16xf32> to vector<16xf32>
    %106 = vector.shape_cast %105 : vector<16xf32> to vector<16x1xf32>
    %107 = vector.broadcast %106 : vector<16x1xf32> to vector<16x16xf32>
    %108 = arith.subf %104, %107 : vector<16x16xf32>
    %109 = math.exp %108 : vector<16x16xf32>
    %110 = arith.mulf %109, %2 : vector<16x16xf32>
    %cst_31 = arith.constant dense<0.000000e+00> : vector<16xf32>
    %111 = vector.multi_reduction <add>, %110, %cst_31 [1] : vector<16x16xf32> to vector<16xf32>
    %112 = vector.shape_cast %111 : vector<16xf32> to vector<16x1xf32>
    %cst_32 = arith.constant 1.000000e-16 : f32
    %113 = vector.broadcast %cst_32 : f32 to vector<16x1xf32>
    %114 = arith.maximumf %112, %113 : vector<16x1xf32>
    %115 = tpu.reciprocal %114 {approx = true} : vector<16x1xf32> -> vector<16x1xf32>
    %116 = vector.broadcast %115 : vector<16x1xf32> to vector<16x16xf32>
    %117 = arith.mulf %110, %116 : vector<16x16xf32>
    %cst_33 = arith.constant dense<0.000000e+00> : vector<16x128xf32>
    %118 = tpu.matmul %117, %102, %cst_33 {dimension_numbers = #tpu.dot_dimension_numbers<[1], [0], [0], [1], [0, 0, 1, 1], [], []>} : vector<16x16xf32>, vector<16x128xf32>, vector<16x128xf32> -> vector<16x128xf32>
    %119 = arith.addf %118, %103 : vector<16x128xf32>
    %120 = vector.extract_strided_slice %23 {offsets = [0, 0], sizes = [16, 128], strides = [1, 1]} : vector<16x512xf32> to vector<16x128xf32>
    %121 = vector.extract_strided_slice %23 {offsets = [0, 128], sizes = [16, 128], strides = [1, 1]} : vector<16x512xf32> to vector<16x128xf32>
    %122 = vector.extract_strided_slice %23 {offsets = [0, 256], sizes = [16, 128], strides = [1, 1]} : vector<16x512xf32> to vector<16x128xf32>
    %123 = vector.extract_strided_slice %23 {offsets = [0, 384], sizes = [16, 128], strides = [1, 1]} : vector<16x512xf32> to vector<16x128xf32>
    %cst_34 = arith.constant dense<0.000000e+00> : vector<16x16xf32>
    %124 = tpu.matmul %120, %121, %cst_34 {dimension_numbers = #tpu.dot_dimension_numbers<[1], [1], [0], [0], [0, 0, 1, 0], [], []>} : vector<16x128xf32>, vector<16x128xf32>, vector<16x16xf32> -> vector<16x16xf32>
    %cst_35 = arith.constant dense<0xFF800000> : vector<16xf32>
    %125 = vector.multi_reduction <maximumf>, %124, %cst_35 [1] : vector<16x16xf32> to vector<16xf32>
    %126 = vector.shape_cast %125 : vector<16xf32> to vector<16x1xf32>
    %127 = vector.broadcast %126 : vector<16x1xf32> to vector<16x16xf32>
    %128 = arith.subf %124, %127 : vector<16x16xf32>
    %129 = math.exp %128 : vector<16x16xf32>
    %130 = arith.mulf %129, %2 : vector<16x16xf32>
    %cst_36 = arith.constant dense<0.000000e+00> : vector<16xf32>
    %131 = vector.multi_reduction <add>, %130, %cst_36 [1] : vector<16x16xf32> to vector<16xf32>
    %132 = vector.shape_cast %131 : vector<16xf32> to vector<16x1xf32>
    %cst_37 = arith.constant 1.000000e-16 : f32
    %133 = vector.broadcast %cst_37 : f32 to vector<16x1xf32>
    %134 = arith.maximumf %132, %133 : vector<16x1xf32>
    %135 = tpu.reciprocal %134 {approx = true} : vector<16x1xf32> -> vector<16x1xf32>
    %136 = vector.broadcast %135 : vector<16x1xf32> to vector<16x16xf32>
    %137 = arith.mulf %130, %136 : vector<16x16xf32>
    %cst_38 = arith.constant dense<0.000000e+00> : vector<16x128xf32>
    %138 = tpu.matmul %137, %122, %cst_38 {dimension_numbers = #tpu.dot_dimension_numbers<[1], [0], [0], [1], [0, 0, 1, 1], [], []>} : vector<16x16xf32>, vector<16x128xf32>, vector<16x128xf32> -> vector<16x128xf32>
    %139 = arith.addf %138, %123 : vector<16x128xf32>
    %140 = arith.addf %119, %139 : vector<16x128xf32>
    %141 = vector.extract_strided_slice %140 {offsets = [0, 0], sizes = [16, 32], strides = [1, 1]} : vector<16x128xf32> to vector<16x32xf32>
    %c0_39 = arith.constant 0 : index
    %c0_40 = arith.constant 0 : index
    %142 = vector.load %arg3[%c0_39, %c0_40] : memref<16x32xf32, #tpu.memory_space<vmem>>, vector<16x32xf32>
    tpu.vector_store %arg3[%c0_39, %c0_40], %141 {strides = array<i32>} : memref<16x32xf32, #tpu.memory_space<vmem>>, vector<16x32xf32>,
    return
  }
}

</mosaic_0001>

<llo_original>
// kernel: gcn_encoder_forward.1
$region0: #{gcn_encoder_forward.1}
  #allocation0 [shape = 'u32[]', space=smem, size = 0x4, offset = 0x4, fixed_abs, tag = 'smem constant byte address 0x4 - core index']
  #allocation1 [shape = 'u32[144,128]{1,0:T(1,128)}', space=vmem, size = 0x12000, scoped, tag = 'internal scratch']
  %s0 = inlined_call_operand.hbm [shape: f32[16,128], index: 0, kind: input, shape index: {}]
  %s1 = inlined_call_operand.hbm [shape: f32[16,16], index: 1, kind: input, shape index: {}]
  %s2 = inlined_call_operand.hbm [shape: bf16[656,512], index: 2, kind: input, shape index: {}]
  %s3 = inlined_call_operand.hbm [shape: f32[16,32], index: 3, kind: output, shape index: {}]
  %s4 = sld [smem:[#allocation0]]
  $region34: #{gcn_encoder_forward.1} parent=0
    _
  %s6 = ssub.s32 1, %s4
  %s7 = scalar_select 0, %s6, %s4
  $region1: #{gcn_encoder_forward.1} parent=0
    #allocation2 [shape = 'u8[8192]{0}', space=vmem, size = 0x2000, scoped, tag = 'input window, operand 0, single buffered']
    #allocation3 [shape = 's32[1]{0}', space=sflag, size = 0x4, scoped, tag = 'scoped memory for gcn_encoder_forward.1']
    #allocation4 [shape = 's32[1]{0}', space=sflag, size = 0x4, scoped, tag = 'scoped memory for gcn_encoder_forward.1']
    #allocation5 [shape = 'u8[8192]{0}', space=vmem, size = 0x2000, scoped, tag = 'input window, operand 1, single buffered']
    #allocation6 [shape = 's32[1]{0}', space=sflag, size = 0x4, scoped, tag = 'scoped memory for gcn_encoder_forward.1']
    #allocation7 [shape = 'u8[671744]{0}', space=vmem, size = 0xa4000, scoped, tag = 'input window, operand 2, single buffered']
    #allocation8 [shape = 'u8[8192]{0}', space=vmem, size = 0x2000, scoped, tag = 'output window, operand 0, single buffered']
    %8 = vsyncpa [#allocation3], 0
    %9 = vsyncpa [#allocation6], 0
    %10 = vsyncpa [#allocation4], 0
    // Predicated region
    $region2: #{gcn_encoder_forward.1} parent=1 // pred_check
      _
    $region3: #{gcn_encoder_forward.1} parent=1 // pred_check_branch
      %12 = sbr.rel (0) target = $region5
    $region4: #{gcn_encoder_forward.1} parent=1 // pred_region
      %s14 = ssub.s32 256, 256
      %15 = vsyncadd [#allocation3], %s14
      %s16 = sshll.u32 [#allocation2], 4
      %s17 = int_to_ptr.vmem [resolvable:$true] %s16
      %22 = dma.hbm_to_vmem [thread:$0]  %s0, 256, %s17, [#allocation3], 128, 128, 8
    $region5: #{gcn_encoder_forward.1} parent=1 // pred_fallthru
      _
    // Predicated region
    $region6: #{gcn_encoder_forward.1} parent=1 // pred_check
      _
    $region7: #{gcn_encoder_forward.1} parent=1 // pred_check_branch
      %24 = sbr.rel (0) target = $region9
    $region8: #{gcn_encoder_forward.1} parent=1 // pred_region
      %s26 = ssub.s32 256, 256
      %27 = vsyncadd [#allocation6], %s26
      %s28 = sshll.u32 [#allocation5], 4
      %s29 = int_to_ptr.vmem [resolvable:$true] %s28
      %34 = dma.hbm_to_vmem [thread:$0]  %s1, 256, %s29, [#allocation6], 128, 128, 8
    $region9: #{gcn_encoder_forward.1} parent=1 // pred_fallthru
      _
    // Predicated region
    $region10: #{gcn_encoder_forward.1} parent=1 // pred_check
      _
    $region11: #{gcn_encoder_forward.1} parent=1 // pred_check_branch
      %36 = sbr.rel (0) target = $region13
    $region12: #{gcn_encoder_forward.1} parent=1 // pred_region
      %s38 = ssub.s32 20992, 20992
      %39 = vsyncadd [#allocation6], %s38
      %s40 = sshll.u32 [#allocation7], 4
      %s41 = int_to_ptr.vmem [resolvable:$true] %s40
      %46 = dma.hbm_to_vmem [thread:$0]  %s2, 20992, %s41, [#allocation6], 256, 256, 16
    $region13: #{gcn_encoder_forward.1} parent=1 // pred_fallthru
      _
    // Predicated region
    $region14: #{gcn_encoder_forward.1} parent=1 // pred_check
      _
    $region15: #{gcn_encoder_forward.1} parent=1 // pred_check_branch
      %48 = sbr.rel (0) target = $region17
    $region16: #{gcn_encoder_forward.1} parent=1 // pred_region
      %49 = dma.done [#allocation3], 256
    $region17: #{gcn_encoder_forward.1} parent=1 // pred_fallthru
      _
    // Predicated region
    $region18: #{gcn_encoder_forward.1} parent=1 // pred_check
      _
    $region19: #{gcn_encoder_forward.1} parent=1 // pred_check_branch
      %51 = sbr.rel (0) target = $region21
    $region20: #{gcn_encoder_forward.1} parent=1 // pred_region
      %52 = dma.done [#allocation6], 256
    $region21: #{gcn_encoder_forward.1} parent=1 // pred_fallthru
      _
    // Predicated region
    $region22: #{gcn_encoder_forward.1} parent=1 // pred_check
      _
    $region23: #{gcn_encoder_forward.1} parent=1 // pred_check_branch
      %54 = sbr.rel (0) target = $region25
    $region24: #{gcn_encoder_forward.1} parent=1 // pred_region
      %55 = dma.done [#allocation6], 20992
    $region25: #{gcn_encoder_forward.1} parent=1 // pred_fallthru
      _
    %v57 = vld [vmem:[#allocation2] sm:$0xff]
    %v58 = vld [vmem:[#allocation2 + $0x8] sm:$0xff]
    %v59 = vpack.c.bf16 %v58, %v57
    %v60 = vld [vmem:[#allocation5] sm:$0xff]
    %v61 = vld [vmem:[#allocation5 + $0x8] sm:$0xff]
    %v62 = vld [vmem:[#allocation7 + $0x300] sm:$0xff]
    %v63 = vld [vmem:[#allocation7 + $0x308] sm:$0xff]
    %v64 = vunpack.c.l.bf16 %v62
    %v65 = vunpack.c.h.bf16 %v62
    %v66 = vunpack.c.l.bf16 %v63
    %v67 = vunpack.c.h.bf16 %v63
    %v68 = vld [vmem:[#allocation7] sm:$0xff]
    %v69 = vld [vmem:[#allocation7 + $0x8] sm:$0xff]
    %v70 = vld [vmem:[#allocation7 + $0x10] sm:$0xff]
    %v71 = vld [vmem:[#allocation7 + $0x18] sm:$0xff]
    %v72 = vld [vmem:[#allocation7 + $0x20] sm:$0xff]
    %v73 = vld [vmem:[#allocation7 + $0x28] sm:$0xff]
    %v74 = vld [vmem:[#allocation7 + $0x30] sm:$0xff]
    %v75 = vld [vmem:[#allocation7 + $0x38] sm:$0xff]
    %v76 = vld [vmem:[#allocation7 + $0x40] sm:$0xff]
    %v77 = vld [vmem:[#allocation7 + $0x48] sm:$0xff]
    %v78 = vld [vmem:[#allocation7 + $0x50] sm:$0xff]
    %v79 = vld [vmem:[#allocation7 + $0x58] sm:$0xff]
    %v80 = vld [vmem:[#allocation7 + $0x60] sm:$0xff]
    %v81 = vld [vmem:[#allocation7 + $0x68] sm:$0xff]
    %v82 = vld [vmem:[#allocation7 + $0x70] sm:$0xff]
    %v83 = vld [vmem:[#allocation7 + $0x78] sm:$0xff]
    %v84 = vld [vmem:[#allocation7 + $0x80] sm:$0xff]
    %v85 = vld [vmem:[#allocation7 + $0x88] sm:$0xff]
    %v86 = vld [vmem:[#allocation7 + $0x90] sm:$0xff]
    %v87 = vld [vmem:[#allocation7 + $0x98] sm:$0xff]
    %v88 = vld [vmem:[#allocation7 + $0xa0] sm:$0xff]
    %v89 = vld [vmem:[#allocation7 + $0xa8] sm:$0xff]
    %v90 = vld [vmem:[#allocation7 + $0xb0] sm:$0xff]
    %v91 = vld [vmem:[#allocation7 + $0xb8] sm:$0xff]
    %v92 = vld [vmem:[#allocation7 + $0xc0] sm:$0xff]
    %v93 = vld [vmem:[#allocation7 + $0xc8] sm:$0xff]
    %v94 = vld [vmem:[#allocation7 + $0xd0] sm:$0xff]
    %v95 = vld [vmem:[#allocation7 + $0xd8] sm:$0xff]
    %v96 = vld [vmem:[#allocation7 + $0xe0] sm:$0xff]
    %v97 = vld [vmem:[#allocation7 + $0xe8] sm:$0xff]
    %v98 = vld [vmem:[#allocation7 + $0xf0] sm:$0xff]
    %v99 = vld [vmem:[#allocation7 + $0xf8] sm:$0xff]
    %v100 = vlaneseq
    %v101 = vshrl.u32 %v100, 7
    %v102 = vsub.s32 0, %v101
    %v103 = vrot.slane %v64, %v102
    %v104 = vlaneseq
    %v105 = vshrl.u32 %v104, 7
    %v106 = vsub.s32 0, %v105
    %v107 = vrot.slane %v65, %v106
    %v108 = vlaneseq
    %v109 = vshrl.u32 %v108, 7
    %v110 = vsub.s32 0, %v109
    %v111 = vrot.slane %v66, %v110
    %v112 = vlaneseq
    %v113 = vshrl.u32 %v112, 7
    %v114 = vsub.s32 0, %v113
    %v115 = vrot.slane %v67, %v114
    %v148 = vunpack.c.l.b16 %v68
    %v149 = vunpack.c.h.b16 %v68
    %v150 = vunpack.c.l.b16 %v69
    %v151 = vunpack.c.h.b16 %v69
    %v152 = vunpack.c.l.b16 %v70
    %v153 = vunpack.c.h.b16 %v70
    %v154 = vunpack.c.l.b16 %v71
    %v155 = vunpack.c.h.b16 %v71
    %v156 = vunpack.c.l.b16 %v72
    %v157 = vunpack.c.h.b16 %v72
    %v158 = vunpack.c.l.b16 %v73
    %v159 = vunpack.c.h.b16 %v73
    %v160 = vunpack.c.l.b16 %v74
    %v161 = vunpack.c.h.b16 %v74
    %v162 = vunpack.c.l.b16 %v75
    %v163 = vunpack.c.h.b16 %v75
    %v164 = vunpack.c.l.b16 %v76
    %v165 = vunpack.c.h.b16 %v76
    %v166 = vunpack.c.l.b16 %v77
    %v167 = vunpack.c.h.b16 %v77
    %v168 = vunpack.c.l.b16 %v78
    %v169 = vunpack.c.h.b16 %v78
    %v170 = vunpack.c.l.b16 %v79
    %v171 = vunpack.c.h.b16 %v79
    %v172 = vunpack.c.l.b16 %v80
    %v173 = vunpack.c.h.b16 %v80
    %v174 = vunpack.c.l.b16 %v81
    %v175 = vunpack.c.h.b16 %v81
    %v176 = vunpack.c.l.b16 %v82
    %v177 = vunpack.c.h.b16 %v82
    %v178 = vunpack.c.l.b16 %v83
    %v179 = vunpack.c.h.b16 %v83
    %v180 = vunpack.c.l.b16 %v84
    %v181 = vunpack.c.h.b16 %v84
    %v182 = vunpack.c.l.b16 %v85
    %v183 = vunpack.c.h.b16 %v85
    %v184 = vunpack.c.l.b16 %v86
    %v185 = vunpack.c.h.b16 %v86
    %v186 = vunpack.c.l.b16 %v87
    %v187 = vunpack.c.h.b16 %v87
    %v188 = vunpack.c.l.b16 %v88
    %v189 = vunpack.c.h.b16 %v88
    %v190 = vunpack.c.l.b16 %v89
    %v191 = vunpack.c.h.b16 %v89
    %v192 = vunpack.c.l.b16 %v90
    %v193 = vunpack.c.h.b16 %v90
    %v194 = vunpack.c.l.b16 %v91
    %v195 = vunpack.c.h.b16 %v91
    %v196 = vunpack.c.l.b16 %v92
    %v197 = vunpack.c.h.b16 %v92
    %v198 = vunpack.c.l.b16 %v93
    %v199 = vunpack.c.h.b16 %v93
    %v200 = vunpack.c.l.b16 %v94
    %v201 = vunpack.c.h.b16 %v94
    %v202 = vunpack.c.l.b16 %v95
    %v203 = vunpack.c.h.b16 %v95
    %v204 = vunpack.c.l.b16 %v96
    %v205 = vunpack.c.h.b16 %v96
    %v206 = vunpack.c.l.b16 %v97
    %v207 = vunpack.c.h.b16 %v97
    %v208 = vunpack.c.l.b16 %v98
    %v209 = vunpack.c.h.b16 %v98
    %v210 = vunpack.c.l.b16 %v99
    %v211 = vunpack.c.h.b16 %v99
    %v212 = vpack.c.b16 %v152, %v148
    %v213 = vpack.c.b16 %v153, %v149
    %v214 = vpack.c.b16 %v154, %v150
    %v215 = vpack.c.b16 %v155, %v151
    %v216 = vpack.c.b16 %v160, %v156
    %v217 = vpack.c.b16 %v161, %v157
    %v218 = vpack.c.b16 %v162, %v158
    %v219 = vpack.c.b16 %v163, %v159
    %v220 = vpack.c.b16 %v168, %v164
    %v221 = vpack.c.b16 %v169, %v165
    %v222 = vpack.c.b16 %v170, %v166
    %v223 = vpack.c.b16 %v171, %v167
    %v224 = vpack.c.b16 %v176, %v172
    %v225 = vpack.c.b16 %v177, %v173
    %v226 = vpack.c.b16 %v178, %v174
    %v227 = vpack.c.b16 %v179, %v175
    %v228 = vpack.c.b16 %v184, %v180
    %v229 = vpack.c.b16 %v185, %v181
    %v230 = vpack.c.b16 %v186, %v182
    %v231 = vpack.c.b16 %v187, %v183
    %v232 = vpack.c.b16 %v192, %v188
    %v233 = vpack.c.b16 %v193, %v189
    %v234 = vpack.c.b16 %v194, %v190
    %v235 = vpack.c.b16 %v195, %v191
    %v236 = vpack.c.b16 %v200, %v196
    %v237 = vpack.c.b16 %v201, %v197
    %v238 = vpack.c.b16 %v202, %v198
    %v239 = vpack.c.b16 %v203, %v199
    %v240 = vpack.c.b16 %v208, %v204
    %v241 = vpack.c.b16 %v209, %v205
    %v242 = vpack.c.b16 %v210, %v206
    %v243 = vpack.c.b16 %v211, %v207
    %276 = vmatprep.subr.bf16.mxu0 %v241
    %277 = vmatpush1.bf16.msra.mxu0 %v240
    %278 = vmatprep.subr.bf16.mxu0 %v237
    %279 = vmatpush1.bf16.msra.mxu0 %v236
    %280 = vmatprep.subr.bf16.mxu0 %v233
    %281 = vmatpush1.bf16.msra.mxu0 %v232
    %282 = vmatprep.subr.bf16.mxu0 %v229
    %283 = vmatpush1.bf16.msra.mxu0 %v228
    %284 = vmatprep.subr.bf16.mxu0 %v225
    %285 = vmatpush1.bf16.msra.mxu0 %v224
    %286 = vmatprep.subr.bf16.mxu0 %v221
    %287 = vmatpush1.bf16.msra.mxu0 %v220
    %288 = vmatprep.subr.bf16.mxu0 %v217
    %289 = vmatpush1.bf16.msra.mxu0 %v216
    %290 = vmatprep.subr.bf16.mxu0 %v213
    %291 = vmatpush1.bf16.msra.mxu0 %v212
    %292 = vmatprep.subr.bf16.mxu0 0
    %293 = vmatpush2.bf16.msra.mxu0 0
    %294 = vmatprep.subr.bf16.mxu0 0
    %295 = vmatpush2.bf16.msra.mxu0 0
    %296 = vmatprep.subr.bf16.mxu0 0
    %297 = vmatpush2.bf16.msra.mxu0 0
    %298 = vmatprep.subr.bf16.mxu0 0
    %299 = vmatpush2.bf16.msra.mxu0 0
    %300 = vmatprep.subr.bf16.mxu0 0
    %301 = vmatpush2.bf16.msra.mxu0 0
    %302 = vmatprep.subr.bf16.mxu0 0
    %303 = vmatpush2.bf16.msra.mxu0 0
    %304 = vmatprep.subr.bf16.mxu0 0
    %305 = vmatpush2.bf16.msra.mxu0 0
    %306 = vmatprep.subr.bf16.mxu0 0
    %307 = vmatpush2.bf16.msra.mxu0 0
    %308 = vmatprep.mubr.bf16.mxu0 0
    %309 = vmatmul.mubr.bf16.gmra.mxu0 %v59
    %v310 = vpop.f32.mrf.mxu0
    %v311 = vadd.f32 %v103, %v310
    %v312 = vpop.f32.mrf.mxu0
    %v313 = vadd.f32 %v107, %v312
    %v314 = vpop.f32.mrf.mxu0
    %v315 = vadd.f32 %v103, %v314
    %v316 = vpop.f32.mrf.mxu0
    %v317 = vadd.f32 %v107, %v316
    %318 = vdwg.mxu0
    %319 = vmatprep.subr.bf16.mxu0 %v243
    %320 = vmatpush1.bf16.msra.mxu0 %v242
    %321 = vmatprep.subr.bf16.mxu0 %v239
    %322 = vmatpush1.bf16.msra.mxu0 %v238
    %323 = vmatprep.subr.bf16.mxu0 %v235
    %324 = vmatpush1.bf16.msra.mxu0 %v234
    %325 = vmatprep.subr.bf16.mxu0 %v231
    %326 = vmatpush1.bf16.msra.mxu0 %v230
    %327 = vmatprep.subr.bf16.mxu0 %v227
    %328 = vmatpush1.bf16.msra.mxu0 %v226
    %329 = vmatprep.subr.bf16.mxu0 %v223
    %330 = vmatpush1.bf16.msra.mxu0 %v222
    %331 = vmatprep.subr.bf16.mxu0 %v219
    %332 = vmatpush1.bf16.msra.mxu0 %v218
    %333 = vmatprep.subr.bf16.mxu0 %v215
    %334 = vmatpush1.bf16.msra.mxu0 %v214
    %335 = vmatprep.subr.bf16.mxu0 0
    %336 = vmatpush2.bf16.msra.mxu0 0
    %337 = vmatprep.subr.bf16.mxu0 0
    %338 = vmatpush2.bf16.msra.mxu0 0
    %339 = vmatprep.subr.bf16.mxu0 0
    %340 = vmatpush2.bf16.msra.mxu0 0
    %341 = vmatprep.subr.bf16.mxu0 0
    %342 = vmatpush2.bf16.msra.mxu0 0
    %343 = vmatprep.subr.bf16.mxu0 0
    %344 = vmatpush2.bf16.msra.mxu0 0
    %345 = vmatprep.subr.bf16.mxu0 0
    %346 = vmatpush2.bf16.msra.mxu0 0
    %347 = vmatprep.subr.bf16.mxu0 0
    %348 = vmatpush2.bf16.msra.mxu0 0
    %349 = vmatprep.subr.bf16.mxu0 0
    %350 = vmatpush2.bf16.msra.mxu0 0
    %351 = vmatprep.mubr.bf16.mxu0 0
    %352 = vmatmul.mubr.bf16.gmra.mxu0 %v59
    %v353 = vpop.f32.mrf.mxu0
    %v354 = vadd.f32 %v111, %v353
    %v355 = vpop.f32.mrf.mxu0
    %v356 = vadd.f32 %v115, %v355
    %v357 = vpop.f32.mrf.mxu0
    %v358 = vadd.f32 %v111, %v357
    %v359 = vpop.f32.mrf.mxu0
    %v360 = vadd.f32 %v115, %v359
    %361 = vdwg.mxu0
    %v362 = vld [vmem:[#allocation7 + $0x100] sm:$0xff]
    %v363 = vld [vmem:[#allocation7 + $0x108] sm:$0xff]
    %v364 = vld [vmem:[#allocation7 + $0x110] sm:$0xff]
    %v365 = vld [vmem:[#allocation7 + $0x118] sm:$0xff]
    %v366 = vld [vmem:[#allocation7 + $0x120] sm:$0xff]
    %v367 = vld [vmem:[#allocation7 + $0x128] sm:$0xff]
    %v368 = vld [vmem:[#allocation7 + $0x130] sm:$0xff]
    %v369 = vld [vmem:[#allocation7 + $0x138] sm:$0xff]
    %v370 = vld [vmem:[#allocation7 + $0x140] sm:$0xff]
    %v371 = vld [vmem:[#allocation7 + $0x148] sm:$0xff]
    %v372 = vld [vmem:[#allocation7 + $0x150] sm:$0xff]
    %v373 = vld [vmem:[#allocation7 + $0x158] sm:$0xff]
    %v374 = vld [vmem:[#allocation7 + $0x160] sm:$0xff]
    %v375 = vld [vmem:[#allocation7 + $0x168] sm:$0xff]
    %v376 = vld [vmem:[#allocation7 + $0x170] sm:$0xff]
    %v377 = vld [vmem:[#allocation7 + $0x178] sm:$0xff]
    %v378 = vld [vmem:[#allocation7 + $0x180] sm:$0xff]
    %v379 = vld [vmem:[#allocation7 + $0x188] sm:$0xff]
    %v380 = vld [vmem:[#allocation7 + $0x190] sm:$0xff]
    %v381 = vld [vmem:[#allocation7 + $0x198] sm:$0xff]
    %v382 = vld [vmem:[#allocation7 + $0x1a0] sm:$0xff]
    %v383 = vld [vmem:[#allocation7 + $0x1a8] sm:$0xff]
    %v384 = vld [vmem:[#allocation7 + $0x1b0] sm:$0xff]
    %v385 = vld [vmem:[#allocation7 + $0x1b8] sm:$0xff]
    %v386 = vld [vmem:[#allocation7 + $0x1c0] sm:$0xff]
    %v387 = vld [vmem:[#allocation7 + $0x1c8] sm:$0xff]
    %v388 = vld [vmem:[#allocation7 + $0x1d0] sm:$0xff]
    %v389 = vld [vmem:[#allocation7 + $0x1d8] sm:$0xff]
    %v390 = vld [vmem:[#allocation7 + $0x1e0] sm:$0xff]
    %v391 = vld [vmem:[#allocation7 + $0x1e8] sm:$0xff]
    %v392 = vld [vmem:[#allocation7 + $0x1f0] sm:$0xff]
    %v393 = vld [vmem:[#allocation7 + $0x1f8] sm:$0xff]
    %v394 = vlaneseq
    %v395 = vshrl.u32 %v394, 7
    %v396 = vsub.s32 1, %v395
    %v397 = vrot.slane %v64, %v396
    %v398 = vlaneseq
    %v399 = vshrl.u32 %v398, 7
    %v400 = vsub.s32 1, %v399
    %v401 = vrot.slane %v65, %v400
    %v402 = vlaneseq
    %v403 = vshrl.u32 %v402, 7
    %v404 = vsub.s32 1, %v403
    %v405 = vrot.slane %v66, %v404
    %v406 = vlaneseq
    %v407 = vshrl.u32 %v406, 7
    %v408 = vsub.s32 1, %v407
    %v409 = vrot.slane %v67, %v408
    %v442 = vunpack.c.l.b16 %v362
    %v443 = vunpack.c.h.b16 %v362
    %v444 = vunpack.c.l.b16 %v363
    %v445 = vunpack.c.h.b16 %v363
    %v446 = vunpack.c.l.b16 %v364
    %v447 = vunpack.c.h.b16 %v364
    %v448 = vunpack.c.l.b16 %v365
    %v449 = vunpack.c.h.b16 %v365
    %v450 = vunpack.c.l.b16 %v366
    %v451 = vunpack.c.h.b16 %v366
    %v452 = vunpack.c.l.b16 %v367
    %v453 = vunpack.c.h.b16 %v367
    %v454 = vunpack.c.l.b16 %v368
    %v455 = vunpack.c.h.b16 %v368
    %v456 = vunpack.c.l.b16 %v369
    %v457 = vunpack.c.h.b16 %v369
    %v458 = vunpack.c.l.b16 %v370
    %v459 = vunpack.c.h.b16 %v370
    %v460 = vunpack.c.l.b16 %v371
    %v461 = vunpack.c.h.b16 %v371
    %v462 = vunpack.c.l.b16 %v372
    %v463 = vunpack.c.h.b16 %v372
    %v464 = vunpack.c.l.b16 %v373
    %v465 = vunpack.c.h.b16 %v373
    %v466 = vunpack.c.l.b16 %v374
    %v467 = vunpack.c.h.b16 %v374
    %v468 = vunpack.c.l.b16 %v375
    %v469 = vunpack.c.h.b16 %v375
    %v470 = vunpack.c.l.b16 %v376
    %v471 = vunpack.c.h.b16 %v376
    %v472 = vunpack.c.l.b16 %v377
    %v473 = vunpack.c.h.b16 %v377
    %v474 = vunpack.c.l.b16 %v378
    %v475 = vunpack.c.h.b16 %v378
    %v476 = vunpack.c.l.b16 %v379
    %v477 = vunpack.c.h.b16 %v379
    %v478 = vunpack.c.l.b16 %v380
    %v479 = vunpack.c.h.b16 %v380
    %v480 = vunpack.c.l.b16 %v381
    %v481 = vunpack.c.h.b16 %v381
    %v482 = vunpack.c.l.b16 %v382
    %v483 = vunpack.c.h.b16 %v382
    %v484 = vunpack.c.l.b16 %v383
    %v485 = vunpack.c.h.b16 %v383
    %v486 = vunpack.c.l.b16 %v384
    %v487 = vunpack.c.h.b16 %v384
    %v488 = vunpack.c.l.b16 %v385
    %v489 = vunpack.c.h.b16 %v385
    %v490 = vunpack.c.l.b16 %v386
    %v491 = vunpack.c.h.b16 %v386
    %v492 = vunpack.c.l.b16 %v387
    %v493 = vunpack.c.h.b16 %v387
    %v494 = vunpack.c.l.b16 %v388
    %v495 = vunpack.c.h.b16 %v388
    %v496 = vunpack.c.l.b16 %v389
    %v497 = vunpack.c.h.b16 %v389
    %v498 = vunpack.c.l.b16 %v390
    %v499 = vunpack.c.h.b16 %v390
    %v500 = vunpack.c.l.b16 %v391
    %v501 = vunpack.c.h.b16 %v391
    %v502 = vunpack.c.l.b16 %v392
    %v503 = vunpack.c.h.b16 %v392
    %v504 = vunpack.c.l.b16 %v393
    %v505 = vunpack.c.h.b16 %v393
    %v506 = vpack.c.b16 %v446, %v442
    %v507 = vpack.c.b16 %v447, %v443
    %v508 = vpack.c.b16 %v448, %v444
    %v509 = vpack.c.b16 %v449, %v445
    %v510 = vpack.c.b16 %v454, %v450
    %v511 = vpack.c.b16 %v455, %v451
    %v512 = vpack.c.b16 %v456, %v452
    %v513 = vpack.c.b16 %v457, %v453
    %v514 = vpack.c.b16 %v462, %v458
    %v515 = vpack.c.b16 %v463, %v459
    %v516 = vpack.c.b16 %v464, %v460
    %v517 = vpack.c.b16 %v465, %v461
    %v518 = vpack.c.b16 %v470, %v466
    %v519 = vpack.c.b16 %v471, %v467
    %v520 = vpack.c.b16 %v472, %v468
    %v521 = vpack.c.b16 %v473, %v469
    %v522 = vpack.c.b16 %v478, %v474
    %v523 = vpack.c.b16 %v479, %v475
    %v524 = vpack.c.b16 %v480, %v476
    %v525 = vpack.c.b16 %v481, %v477
    %v526 = vpack.c.b16 %v486, %v482
    %v527 = vpack.c.b16 %v487, %v483
    %v528 = vpack.c.b16 %v488, %v484
    %v529 = vpack.c.b16 %v489, %v485
    %v530 = vpack.c.b16 %v494, %v490
    %v531 = vpack.c.b16 %v495, %v491
    %v532 = vpack.c.b16 %v496, %v492
    %v533 = vpack.c.b16 %v497, %v493
    %v534 = vpack.c.b16 %v502, %v498
    %v535 = vpack.c.b16 %v503, %v499
    %v536 = vpack.c.b16 %v504, %v500
    %v537 = vpack.c.b16 %v505, %v501
    %570 = vmatprep.subr.bf16.mxu0 %v535
    %571 = vmatpush1.bf16.msra.mxu0 %v534
    %572 = vmatprep.subr.bf16.mxu0 %v531
    %573 = vmatpush1.bf16.msra.mxu0 %v530
    %574 = vmatprep.subr.bf16.mxu0 %v527
    %575 = vmatpush1.bf16.msra.mxu0 %v526
    %576 = vmatprep.subr.bf16.mxu0 %v523
    %577 = vmatpush1.bf16.msra.mxu0 %v522
    %578 = vmatprep.subr.bf16.mxu0 %v519
    %579 = vmatpush1.bf16.msra.mxu0 %v518
    %580 = vmatprep.subr.bf16.mxu0 %v515
    %581 = vmatpush1.bf16.msra.mxu0 %v514
    %582 = vmatprep.subr.bf16.mxu0 %v511
    %583 = vmatpush1.bf16.msra.mxu0 %v510
    %584 = vmatprep.subr.bf16.mxu0 %v507
    %585 = vmatpush1.bf16.msra.mxu0 %v506
    %586 = vmatprep.subr.bf16.mxu0 0
    %587 = vmatpush2.bf16.msra.mxu0 0
    %588 = vmatprep.subr.bf16.mxu0 0
    %589 = vmatpush2.bf16.msra.mxu0 0
    %590 = vmatprep.subr.bf16.mxu0 0
    %591 = vmatpush2.bf16.msra.mxu0 0
    %592 = vmatprep.subr.bf16.mxu0 0
    %593 = vmatpush2.bf16.msra.mxu0 0
    %594 = vmatprep.subr.bf16.mxu0 0
    %595 = vmatpush2.bf16.msra.mxu0 0
    %596 = vmatprep.subr.bf16.mxu0 0
    %597 = vmatpush2.bf16.msra.mxu0 0
    %598 = vmatprep.subr.bf16.mxu0 0
    %599 = vmatpush2.bf16.msra.mxu0 0
    %600 = vmatprep.subr.bf16.mxu0 0
    %601 = vmatpush2.bf16.msra.mxu0 0
    %602 = vmatprep.mubr.bf16.mxu0 0
    %603 = vmatmul.mubr.bf16.gmra.mxu0 %v59
    %v604 = vpop.f32.mrf.mxu0
    %v605 = vadd.f32 %v397, %v604
    %v606 = vpop.f32.mrf.mxu0
    %v607 = vadd.f32 %v401, %v606
    %v608 = vpop.f32.mrf.mxu0
    %v609 = vadd.f32 %v397, %v608
    %v610 = vpop.f32.mrf.mxu0
    %v611 = vadd.f32 %v401, %v610
    %612 = vdwg.mxu0
    %613 = vmatprep.subr.bf16.mxu0 %v537
    %614 = vmatpush1.bf16.msra.mxu0 %v536
    %615 = vmatprep.subr.bf16.mxu0 %v533
    %616 = vmatpush1.bf16.msra.mxu0 %v532
    %617 = vmatprep.subr.bf16.mxu0 %v529
    %618 = vmatpush1.bf16.msra.mxu0 %v528
    %619 = vmatprep.subr.bf16.mxu0 %v525
    %620 = vmatpush1.bf16.msra.mxu0 %v524
    %621 = vmatprep.subr.bf16.mxu0 %v521
    %622 = vmatpush1.bf16.msra.mxu0 %v520
    %623 = vmatprep.subr.bf16.mxu0 %v517
    %624 = vmatpush1.bf16.msra.mxu0 %v516
    %625 = vmatprep.subr.bf16.mxu0 %v513
    %626 = vmatpush1.bf16.msra.mxu0 %v512
    %627 = vmatprep.subr.bf16.mxu0 %v509
    %628 = vmatpush1.bf16.msra.mxu0 %v508
    %629 = vmatprep.subr.bf16.mxu0 0
    %630 = vmatpush2.bf16.msra.mxu0 0
    %631 = vmatprep.subr.bf16.mxu0 0
    %632 = vmatpush2.bf16.msra.mxu0 0
    %633 = vmatprep.subr.bf16.mxu0 0
    %634 = vmatpush2.bf16.msra.mxu0 0
    %635 = vmatprep.subr.bf16.mxu0 0
    %636 = vmatpush2.bf16.msra.mxu0 0
    %637 = vmatprep.subr.bf16.mxu0 0
    %638 = vmatpush2.bf16.msra.mxu0 0
    %639 = vmatprep.subr.bf16.mxu0 0
    %640 = vmatpush2.bf16.msra.mxu0 0
    %641 = vmatprep.subr.bf16.mxu0 0
    %642 = vmatpush2.bf16.msra.mxu0 0
    %643 = vmatprep.subr.bf16.mxu0 0
    %644 = vmatpush2.bf16.msra.mxu0 0
    %645 = vmatprep.mubr.bf16.mxu0 0
    %646 = vmatmul.mubr.bf16.gmra.mxu0 %v59
    %v647 = vpop.f32.mrf.mxu0
    %v648 = vadd.f32 %v405, %v647
    %v649 = vpop.f32.mrf.mxu0
    %v650 = vadd.f32 %v409, %v649
    %v651 = vpop.f32.mrf.mxu0
    %v652 = vadd.f32 %v405, %v651
    %v653 = vpop.f32.mrf.mxu0
    %v654 = vadd.f32 %v409, %v653
    %655 = vdwg.mxu0
    %v656 = vld [vmem:[#allocation7 + $0x200] sm:$0xff]
    %v657 = vld [vmem:[#allocation7 + $0x208] sm:$0xff]
    %v658 = vld [vmem:[#allocation7 + $0x210] sm:$0xff]
    %v659 = vld [vmem:[#allocation7 + $0x218] sm:$0xff]
    %v660 = vld [vmem:[#allocation7 + $0x220] sm:$0xff]
    %v661 = vld [vmem:[#allocation7 + $0x228] sm:$0xff]
    %v662 = vld [vmem:[#allocation7 + $0x230] sm:$0xff]
    %v663 = vld [vmem:[#allocation7 + $0x238] sm:$0xff]
    %v664 = vld [vmem:[#allocation7 + $0x240] sm:$0xff]
    %v665 = vld [vmem:[#allocation7 + $0x248] sm:$0xff]
    %v666 = vld [vmem:[#allocation7 + $0x250] sm:$0xff]
    %v667 = vld [vmem:[#allocation7 + $0x258] sm:$0xff]
    %v668 = vld [vmem:[#allocation7 + $0x260] sm:$0xff]
    %v669 = vld [vmem:[#allocation7 + $0x268] sm:$0xff]
    %v670 = vld [vmem:[#allocation7 + $0x270] sm:$0xff]
    %v671 = vld [vmem:[#allocation7 + $0x278] sm:$0xff]
    %v672 = vld [vmem:[#allocation7 + $0x280] sm:$0xff]
    %v673 = vld [vmem:[#allocation7 + $0x288] sm:$0xff]
    %v674 = vld [vmem:[#allocation7 + $0x290] sm:$0xff]
    %v675 = vld [vmem:[#allocation7 + $0x298] sm:$0xff]
    %v676 = vld [vmem:[#allocation7 + $0x2a0] sm:$0xff]
    %v677 = vld [vmem:[#allocation7 + $0x2a8] sm:$0xff]
    %v678 = vld [vmem:[#allocation7 + $0x2b0] sm:$0xff]
    %v679 = vld [vmem:[#allocation7 + $0x2b8] sm:$0xff]
    %v680 = vld [vmem:[#allocation7 + $0x2c0] sm:$0xff]
    %v681 = vld [vmem:[#allocation7 + $0x2c8] sm:$0xff]
    %v682 = vld [vmem:[#allocation7 + $0x2d0] sm:$0xff]
    %v683 = vld [vmem:[#allocation7 + $0x2d8] sm:$0xff]
    %v684 = vld [vmem:[#allocation7 + $0x2e0] sm:$0xff]
    %v685 = vld [vmem:[#allocation7 + $0x2e8] sm:$0xff]
    %v686 = vld [vmem:[#allocation7 + $0x2f0] sm:$0xff]
    %v687 = vld [vmem:[#allocation7 + $0x2f8] sm:$0xff]
    %v688 = vlaneseq
    %v689 = vshrl.u32 %v688, 7
    %v690 = vsub.s32 2, %v689
    %v691 = vrot.slane %v64, %v690
    %v692 = vlaneseq
    %v693 = vshrl.u32 %v692, 7
    %v694 = vsub.s32 2, %v693
    %v695 = vrot.slane %v65, %v694
    %v696 = vlaneseq
    %v697 = vshrl.u32 %v696, 7
    %v698 = vsub.s32 2, %v697
    %v699 = vrot.slane %v66, %v698
    %v700 = vlaneseq
    %v701 = vshrl.u32 %v700, 7
    %v702 = vsub.s32 2, %v701
    %v703 = vrot.slane %v67, %v702
    %v736 = vunpack.c.l.b16 %v656
    %v737 = vunpack.c.h.b16 %v656
    %v738 = vunpack.c.l.b16 %v657
    %v739 = vunpack.c.h.b16 %v657
    %v740 = vunpack.c.l.b16 %v658
    %v741 = vunpack.c.h.b16 %v658
    %v742 = vunpack.c.l.b16 %v659
    %v743 = vunpack.c.h.b16 %v659
    %v744 = vunpack.c.l.b16 %v660
    %v745 = vunpack.c.h.b16 %v660
    %v746 = vunpack.c.l.b16 %v661
    %v747 = vunpack.c.h.b16 %v661
    %v748 = vunpack.c.l.b16 %v662
    %v749 = vunpack.c.h.b16 %v662
    %v750 = vunpack.c.l.b16 %v663
    %v751 = vunpack.c.h.b16 %v663
    %v752 = vunpack.c.l.b16 %v664
    %v753 = vunpack.c.h.b16 %v664
    %v754 = vunpack.c.l.b16 %v665
    %v755 = vunpack.c.h.b16 %v665
    %v756 = vunpack.c.l.b16 %v666
    %v757 = vunpack.c.h.b16 %v666
    %v758 = vunpack.c.l.b16 %v667
    %v759 = vunpack.c.h.b16 %v667
    %v760 = vunpack.c.l.b16 %v668
    %v761 = vunpack.c.h.b16 %v668
    %v762 = vunpack.c.l.b16 %v669
    %v763 = vunpack.c.h.b16 %v669
    %v764 = vunpack.c.l.b16 %v670
    %v765 = vunpack.c.h.b16 %v670
    %v766 = vunpack.c.l.b16 %v671
    %v767 = vunpack.c.h.b16 %v671
    %v768 = vunpack.c.l.b16 %v672
    %v769 = vunpack.c.h.b16 %v672
    %v770 = vunpack.c.l.b16 %v673
    %v771 = vunpack.c.h.b16 %v673
    %v772 = vunpack.c.l.b16 %v674
    %v773 = vunpack.c.h.b16 %v674
    %v774 = vunpack.c.l.b16 %v675
    %v775 = vunpack.c.h.b16 %v675
    %v776 = vunpack.c.l.b16 %v676
    %v777 = vunpack.c.h.b16 %v676
    %v778 = vunpack.c.l.b16 %v677
    %v779 = vunpack.c.h.b16 %v677
    %v780 = vunpack.c.l.b16 %v678
    %v781 = vunpack.c.h.b16 %v678
    %v782 = vunpack.c.l.b16 %v679
    %v783 = vunpack.c.h.b16 %v679
    %v784 = vunpack.c.l.b16 %v680
    %v785 = vunpack.c.h.b16 %v680
    %v786 = vunpack.c.l.b16 %v681
    %v787 = vunpack.c.h.b16 %v681
    %v788 = vunpack.c.l.b16 %v682
    %v789 = vunpack.c.h.b16 %v682
    %v790 = vunpack.c.l.b16 %v683
    %v791 = vunpack.c.h.b16 %v683
    %v792 = vunpack.c.l.b16 %v684
    %v793 = vunpack.c.h.b16 %v684
    %v794 = vunpack.c.l.b16 %v685
    %v795 = vunpack.c.h.b16 %v685
    %v796 = vunpack.c.l.b16 %v686
    %v797 = vunpack.c.h.b16 %v686
    %v798 = vunpack.c.l.b16 %v687
    %v799 = vunpack.c.h.b16 %v687
    %v800 = vpack.c.b16 %v740, %v736
    %v801 = vpack.c.b16 %v741, %v737
    %v802 = vpack.c.b16 %v742, %v738
    %v803 = vpack.c.b16 %v743, %v739
    %v804 = vpack.c.b16 %v748, %v744
    %v805 = vpack.c.b16 %v749, %v745
    %v806 = vpack.c.b16 %v750, %v746
    %v807 = vpack.c.b16 %v751, %v747
    %v808 = vpack.c.b16 %v756, %v752
    %v809 = vpack.c.b16 %v757, %v753
    %v810 = vpack.c.b16 %v758, %v754
    %v811 = vpack.c.b16 %v759, %v755
    %v812 = vpack.c.b16 %v764, %v760
    %v813 = vpack.c.b16 %v765, %v761
    %v814 = vpack.c.b16 %v766, %v762
    %v815 = vpack.c.b16 %v767, %v763
    %v816 = vpack.c.b16 %v772, %v768
    %v817 = vpack.c.b16 %v773, %v769
    %v818 = vpack.c.b16 %v774, %v770
    %v819 = vpack.c.b16 %v775, %v771
    %v820 = vpack.c.b16 %v780, %v776
    %v821 = vpack.c.b16 %v781, %v777
    %v822 = vpack.c.b16 %v782, %v778
    %v823 = vpack.c.b16 %v783, %v779
    %v824 = vpack.c.b16 %v788, %v784
    %v825 = vpack.c.b16 %v789, %v785
    %v826 = vpack.c.b16 %v790, %v786
    %v827 = vpack.c.b16 %v791, %v787
    %v828 = vpack.c.b16 %v796, %v792
    %v829 = vpack.c.b16 %v797, %v793
    %v830 = vpack.c.b16 %v798, %v794
    %v831 = vpack.c.b16 %v799, %v795
    %864 = vmatprep.subr.bf16.mxu0 %v829
    %865 = vmatpush1.bf16.msra.mxu0 %v828
    %866 = vmatprep.subr.bf16.mxu0 %v825
    %867 = vmatpush1.bf16.msra.mxu0 %v824
    %868 = vmatprep.subr.bf16.mxu0 %v821
    %869 = vmatpush1.bf16.msra.mxu0 %v820
    %870 = vmatprep.subr.bf16.mxu0 %v817
    %871 = vmatpush1.bf16.msra.mxu0 %v816
    %872 = vmatprep.subr.bf16.mxu0 %v813
    %873 = vmatpush1.bf16.msra.mxu0 %v812
    %874 = vmatprep.subr.bf16.mxu0 %v809
    %875 = vmatpush1.bf16.msra.mxu0 %v808
    %876 = vmatprep.subr.bf16.mxu0 %v805
    %877 = vmatpush1.bf16.msra.mxu0 %v804
    %878 = vmatprep.subr.bf16.mxu0 %v801
    %879 = vmatpush1.bf16.msra.mxu0 %v800
    %880 = vmatprep.subr.bf16.mxu0 0
    %881 = vmatpush2.bf16.msra.mxu0 0
    %882 = vmatprep.subr.bf16.mxu0 0
    %883 = vmatpush2.bf16.msra.mxu0 0
    %884 = vmatprep.subr.bf16.mxu0 0
    %885 = vmatpush2.bf16.msra.mxu0 0
    %886 = vmatprep.subr.bf16.mxu0 0
    %887 = vmatpush2.bf16.msra.mxu0 0
    %888 = vmatprep.subr.bf16.mxu0 0
    %889 = vmatpush2.bf16.msra.mxu0 0
    %890 = vmatprep.subr.bf16.mxu0 0
    %891 = vmatpush2.bf16.msra.mxu0 0
    %892 = vmatprep.subr.bf16.mxu0 0
    %893 = vmatpush2.bf16.msra.mxu0 0
    %894 = vmatprep.subr.bf16.mxu0 0
    %895 = vmatpush2.bf16.msra.mxu0 0
    %896 = vmatprep.mubr.bf16.mxu0 0
    %897 = vmatmul.mubr.bf16.gmra.mxu0 %v59
    %v898 = vpop.f32.mrf.mxu0
    %v899 = vadd.f32 %v691, %v898
    %v900 = vpop.f32.mrf.mxu0
    %v901 = vadd.f32 %v695, %v900
    %v902 = vpop.f32.mrf.mxu0
    %v903 = vadd.f32 %v691, %v902
    %v904 = vpop.f32.mrf.mxu0
    %v905 = vadd.f32 %v695, %v904
    %906 = vdwg.mxu0
    %907 = vmatprep.subr.bf16.mxu0 %v831
    %908 = vmatpush1.bf16.msra.mxu0 %v830
    %909 = vmatprep.subr.bf16.mxu0 %v827
    %910 = vmatpush1.bf16.msra.mxu0 %v826
    %911 = vmatprep.subr.bf16.mxu0 %v823
    %912 = vmatpush1.bf16.msra.mxu0 %v822
    %913 = vmatprep.subr.bf16.mxu0 %v819
    %914 = vmatpush1.bf16.msra.mxu0 %v818
    %915 = vmatprep.subr.bf16.mxu0 %v815
    %916 = vmatpush1.bf16.msra.mxu0 %v814
    %917 = vmatprep.subr.bf16.mxu0 %v811
    %918 = vmatpush1.bf16.msra.mxu0 %v810
    %919 = vmatprep.subr.bf16.mxu0 %v807
    %920 = vmatpush1.bf16.msra.mxu0 %v806
    %921 = vmatprep.subr.bf16.mxu0 %v803
    %922 = vmatpush1.bf16.msra.mxu0 %v802
    %923 = vmatprep.subr.bf16.mxu0 0
    %924 = vmatpush2.bf16.msra.mxu0 0
    %925 = vmatprep.subr.bf16.mxu0 0
    %926 = vmatpush2.bf16.msra.mxu0 0
    %927 = vmatprep.subr.bf16.mxu0 0
    %928 = vmatpush2.bf16.msra.mxu0 0
    %929 = vmatprep.subr.bf16.mxu0 0
    %930 = vmatpush2.bf16.msra.mxu0 0
    %931 = vmatprep.subr.bf16.mxu0 0
    %932 = vmatpush2.bf16.msra.mxu0 0
    %933 = vmatprep.subr.bf16.mxu0 0
    %934 = vmatpush2.bf16.msra.mxu0 0
    %935 = vmatprep.subr.bf16.mxu0 0
    %936 = vmatpush2.bf16.msra.mxu0 0
    %937 = vmatprep.subr.bf16.mxu0 0
    %938 = vmatpush2.bf16.msra.mxu0 0
    %939 = vmatprep.mubr.bf16.mxu0 0
    %940 = vmatmul.mubr.bf16.gmra.mxu0 %v59
    %v941 = vpop.f32.mrf.mxu0
    %v942 = vadd.f32 %v699, %v941
    %v943 = vpop.f32.mrf.mxu0
    %v944 = vadd.f32 %v703, %v943
    %v945 = vpop.f32.mrf.mxu0
    %v946 = vadd.f32 %v699, %v945
    %v947 = vpop.f32.mrf.mxu0
    %v948 = vadd.f32 %v703, %v947
    %949 = vdwg.mxu0
    %950 = vmatprep.subr.mxu0 0.0
    %951 = vmatpush1.xpose.msra.mxu0 0.0
    %952 = vmatprep.subr.mxu0 0.0
    %953 = vmatpush1.xpose.msra.mxu0 0.0
    %954 = vmatprep.subr.mxu0 0.0
    %955 = vmatpush1.xpose.msra.mxu0 0.0
    %956 = vmatprep.subr.mxu0 0.0
    %957 = vmatpush1.xpose.msra.mxu0 0.0
    %958 = vmatprep.subr.mxu0 0.0
    %959 = vmatpush1.xpose.msra.mxu0 0.0
    %960 = vmatprep.subr.mxu0 0.0
    %961 = vmatpush1.xpose.msra.mxu0 0.0
    %962 = vmatprep.subr.mxu0 0.0
    %963 = vmatpush1.xpose.msra.mxu0 0.0
    %964 = vmatprep.subr.mxu0 0.0
    %965 = vmatpush1.xpose.msra.mxu0 0.0
    %966 = vmatprep.subr.mxu0 0.0
    %967 = vmatpush1.xpose.msra.mxu0 0.0
    %968 = vmatprep.subr.mxu0 0.0
    %969 = vmatpush1.xpose.msra.mxu0 0.0
    %970 = vmatprep.subr.mxu0 0.0
    %971 = vmatpush1.xpose.msra.mxu0 0.0
    %972 = vmatprep.subr.mxu0 0.0
    %973 = vmatpush1.xpose.msra.mxu0 0.0
    %974 = vmatprep.subr.mxu0 0.0
    %975 = vmatpush1.xpose.msra.mxu0 0.0
    %976 = vmatprep.subr.mxu0 0.0
    %977 = vmatpush1.xpose.msra.mxu0 0.0
    %978 = vmatprep.subr.mxu0 0.0
    %979 = vmatpush1.xpose.msra.mxu0 %v317
    %980 = vmatprep.subr.mxu0 0.0
    %981 = vmatpush1.xpose.msra.mxu0 %v313
    %982 = vmatprep.subr.mxu0 0.0
    %983 = vmatpush2.xpose.msra.mxu0 0.0
    %984 = vmatprep.subr.mxu0 0.0
    %985 = vmatpush2.xpose.msra.mxu0 0.0
    %986 = vmatprep.subr.mxu0 0.0
    %987 = vmatpush2.xpose.msra.mxu0 0.0
    %988 = vmatprep.subr.mxu0 0.0
    %989 = vmatpush2.xpose.msra.mxu0 0.0
    %990 = vmatprep.subr.mxu0 0.0
    %991 = vmatpush2.xpose.msra.mxu0 0.0
    %992 = vmatprep.subr.mxu0 0.0
    %993 = vmatpush2.xpose.msra.mxu0 0.0
    %994 = vmatprep.subr.mxu0 0.0
    %995 = vmatpush2.xpose.msra.mxu0 0.0
    %996 = vmatprep.subr.mxu0 0.0
    %997 = vmatpush2.xpose.msra.mxu0 0.0
    %998 = vmatprep.subr.mxu0 0.0
    %999 = vmatpush2.xpose.msra.mxu0 0.0
    %1000 = vmatprep.subr.mxu0 0.0
    %1001 = vmatpush2.xpose.msra.mxu0 0.0
    %1002 = vmatprep.subr.mxu0 0.0
    %1003 = vmatpush2.xpose.msra.mxu0 0.0
    %1004 = vmatprep.subr.mxu0 0.0
    %1005 = vmatpush2.xpose.msra.mxu0 0.0
    %1006 = vmatprep.subr.mxu0 0.0
    %1007 = vmatpush2.xpose.msra.mxu0 0.0
    %1008 = vmatprep.subr.mxu0 0.0
    %1009 = vmatpush2.xpose.msra.mxu0 0.0
    %1010 = vmatprep.subr.mxu0 0.0
    %1011 = vmatpush2.xpose.msra.mxu0 0.0
    %1012 = vmatprep.subr.mxu0 0.0
    %1013 = vmatpush2.xpose.msra.mxu0 0.0
    %1014 = vmatprep.mubr.f32.mxu0 0.0
    %1015 = vmatmul.mubr.f32.gmra.mxu0 %v311
    %v1016 = vpop.f32.mrf.mxu0
    %v1017 = vadd.f32 0.0, %v1016
    %v1018 = vpop.f32.mrf.mxu0
    %1019 = vmatprep.mubr.f32.mxu0 0.0
    %1020 = vmatmul.mubr.f32.gmra.mxu0 %v315
    %v1021 = vpop.f32.mrf.mxu0
    %v1022 = vadd.f32 0.0, %v1021
    %v1023 = vpop.f32.mrf.mxu0
    %1024 = vdwg.mxu0
    %vm1025 = vcmask 130048
    %v1026 = vsel %vm1025, %v1017, -inf
    %1027 = vmax.xlane.f32.xlu0 %v1026
    %v1028 = vpop.xlane.xlu0 %1027
    %v1029 = vsel %vm1025, %v1022, -inf
    %1030 = vmax.xlane.f32.xlu0 %v1029
    %v1031 = vpop.xlane.xlu0 %1030
    %v1032 = vsub.f32 %v1017, %v1028
    %v1033 = vsub.f32 %v1022, %v1031
    %v1034 = vmul.f32 %v1032, 1.442695
    %v1035 = vpow.pop %v1034
    %v1036 = vmul.f32 %v1033, 1.442695
    %v1037 = vpow.pop %v1036
    %v1038 = vmul.f32 %v1035, %v60
    %v1039 = vmul.f32 %v1037, %v61
    %v1040 = vsel %vm1025, %v1038, 0.0
    %1041 = vadd.xlane.f32.xlu0 %v1040
    %v1042 = vpop.xlane.xlu0 %1041
    %v1043 = vsel %vm1025, %v1039, 0.0
    %1044 = vadd.xlane.f32.xlu0 %v1043
    %v1045 = vpop.xlane.xlu0 %1044
    %v1046 = vmax.f32 %v1042, 1e-16
    %v1047 = vmax.f32 %v1045, 1e-16
    %v1048 = vrcp.pop %v1046
    %v1049 = vrcp.pop %v1047
    %v1050 = vmul.f32 %v1038, %v1048
    %v1051 = vmul.f32 %v1039, %v1049
    %v1053 = vsel %vm1025, %v1050, 0
    %v1056 = vsel %vm1025, %v1051, 0
    %1058 = vmatprep.subr.mxu0 0.0
    %1059 = vmatpush1.msra.mxu0 0.0
    %1060 = vmatprep.subr.mxu0 0.0
    %1061 = vmatpush1.msra.mxu0 0.0
    %1062 = vmatprep.subr.mxu0 0.0
    %1063 = vmatpush1.msra.mxu0 0.0
    %1064 = vmatprep.subr.mxu0 0.0
    %1065 = vmatpush1.msra.mxu0 0.0
    %1066 = vmatprep.subr.mxu0 0.0
    %1067 = vmatpush1.msra.mxu0 0.0
    %1068 = vmatprep.subr.mxu0 0.0
    %1069 = vmatpush1.msra.mxu0 0.0
    %1070 = vmatprep.subr.mxu0 0.0
    %1071 = vmatpush1.msra.mxu0 0.0
    %1072 = vmatprep.subr.mxu0 0.0
    %1073 = vmatpush1.msra.mxu0 0.0
    %1074 = vmatprep.subr.mxu0 0.0
    %1075 = vmatpush1.msra.mxu0 0.0
    %1076 = vmatprep.subr.mxu0 0.0
    %1077 = vmatpush1.msra.mxu0 0.0
    %1078 = vmatprep.subr.mxu0 0.0
    %1079 = vmatpush1.msra.mxu0 0.0
    %1080 = vmatprep.subr.mxu0 0.0
    %1081 = vmatpush1.msra.mxu0 0.0
    %1082 = vmatprep.subr.mxu0 0.0
    %1083 = vmatpush1.msra.mxu0 0.0
    %1084 = vmatprep.subr.mxu0 0.0
    %1085 = vmatpush1.msra.mxu0 0.0
    %1086 = vmatprep.subr.mxu0 0.0
    %1087 = vmatpush1.msra.mxu0 %v358
    %1088 = vmatprep.subr.mxu0 0.0
    %1089 = vmatpush1.msra.mxu0 %v354
    %1090 = vmatprep.subr.mxu0 0.0
    %1091 = vmatpush2.msra.mxu0 0.0
    %1092 = vmatprep.subr.mxu0 0.0
    %1093 = vmatpush2.msra.mxu0 0.0
    %1094 = vmatprep.subr.mxu0 0.0
    %1095 = vmatpush2.msra.mxu0 0.0
    %1096 = vmatprep.subr.mxu0 0.0
    %1097 = vmatpush2.msra.mxu0 0.0
    %1098 = vmatprep.subr.mxu0 0.0
    %1099 = vmatpush2.msra.mxu0 0.0
    %1100 = vmatprep.subr.mxu0 0.0
    %1101 = vmatpush2.msra.mxu0 0.0
    %1102 = vmatprep.subr.mxu0 0.0
    %1103 = vmatpush2.msra.mxu0 0.0
    %1104 = vmatprep.subr.mxu0 0.0
    %1105 = vmatpush2.msra.mxu0 0.0
    %1106 = vmatprep.subr.mxu0 0.0
    %1107 = vmatpush2.msra.mxu0 0.0
    %1108 = vmatprep.subr.mxu0 0.0
    %1109 = vmatpush2.msra.mxu0 0.0
    %1110 = vmatprep.subr.mxu0 0.0
    %1111 = vmatpush2.msra.mxu0 0.0
    %1112 = vmatprep.subr.mxu0 0.0
    %1113 = vmatpush2.msra.mxu0 0.0
    %1114 = vmatprep.subr.mxu0 0.0
    %1115 = vmatpush2.msra.mxu0 0.0
    %1116 = vmatprep.subr.mxu0 0.0
    %1117 = vmatpush2.msra.mxu0 0.0
    %1118 = vmatprep.subr.mxu0 0.0
    %1119 = vmatpush2.msra.mxu0 0.0
    %1120 = vmatprep.subr.mxu0 0.0
    %1121 = vmatpush2.msra.mxu0 0.0
    %1122 = vmatprep.mubr.f32.mxu0 0.0
    %1123 = vmatmul.mubr.f32.gmra.mxu0 %v1053
    %v1124 = vpop.f32.mrf.mxu0
    %v1125 = vadd.f32 %v356, %v1124
    %v1126 = vpop.f32.mrf.mxu0
    %1127 = vmatprep.mubr.f32.mxu0 0.0
    %1128 = vmatmul.mubr.f32.gmra.mxu0 %v1056
    %v1129 = vpop.f32.mrf.mxu0
    %v1130 = vadd.f32 %v360, %v1129
    %v1131 = vpop.f32.mrf.mxu0
    %1132 = vdwg.mxu0
    %1133 = vmatprep.subr.mxu0 0.0
    %1134 = vmatpush1.xpose.msra.mxu0 0.0
    %1135 = vmatprep.subr.mxu0 0.0
    %1136 = vmatpush1.xpose.msra.mxu0 0.0
    %1137 = vmatprep.subr.mxu0 0.0
    %1138 = vmatpush1.xpose.msra.mxu0 0.0
    %1139 = vmatprep.subr.mxu0 0.0
    %1140 = vmatpush1.xpose.msra.mxu0 0.0
    %1141 = vmatprep.subr.mxu0 0.0
    %1142 = vmatpush1.xpose.msra.mxu0 0.0
    %1143 = vmatprep.subr.mxu0 0.0
    %1144 = vmatpush1.xpose.msra.mxu0 0.0
    %1145 = vmatprep.subr.mxu0 0.0
    %1146 = vmatpush1.xpose.msra.mxu0 0.0
    %1147 = vmatprep.subr.mxu0 0.0
    %1148 = vmatpush1.xpose.msra.mxu0 0.0
    %1149 = vmatprep.subr.mxu0 0.0
    %1150 = vmatpush1.xpose.msra.mxu0 0.0
    %1151 = vmatprep.subr.mxu0 0.0
    %1152 = vmatpush1.xpose.msra.mxu0 0.0
    %1153 = vmatprep.subr.mxu0 0.0
    %1154 = vmatpush1.xpose.msra.mxu0 0.0
    %1155 = vmatprep.subr.mxu0 0.0
    %1156 = vmatpush1.xpose.msra.mxu0 0.0
    %1157 = vmatprep.subr.mxu0 0.0
    %1158 = vmatpush1.xpose.msra.mxu0 0.0
    %1159 = vmatprep.subr.mxu0 0.0
    %1160 = vmatpush1.xpose.msra.mxu0 0.0
    %1161 = vmatprep.subr.mxu0 0.0
    %1162 = vmatpush1.xpose.msra.mxu0 %v611
    %1163 = vmatprep.subr.mxu0 0.0
    %1164 = vmatpush1.xpose.msra.mxu0 %v607
    %1165 = vmatprep.subr.mxu0 0.0
    %1166 = vmatpush2.xpose.msra.mxu0 0.0
    %1167 = vmatprep.subr.mxu0 0.0
    %1168 = vmatpush2.xpose.msra.mxu0 0.0
    %1169 = vmatprep.subr.mxu0 0.0
    %1170 = vmatpush2.xpose.msra.mxu0 0.0
    %1171 = vmatprep.subr.mxu0 0.0
    %1172 = vmatpush2.xpose.msra.mxu0 0.0
    %1173 = vmatprep.subr.mxu0 0.0
    %1174 = vmatpush2.xpose.msra.mxu0 0.0
    %1175 = vmatprep.subr.mxu0 0.0
    %1176 = vmatpush2.xpose.msra.mxu0 0.0
    %1177 = vmatprep.subr.mxu0 0.0
    %1178 = vmatpush2.xpose.msra.mxu0 0.0
    %1179 = vmatprep.subr.mxu0 0.0
    %1180 = vmatpush2.xpose.msra.mxu0 0.0
    %1181 = vmatprep.subr.mxu0 0.0
    %1182 = vmatpush2.xpose.msra.mxu0 0.0
    %1183 = vmatprep.subr.mxu0 0.0
    %1184 = vmatpush2.xpose.msra.mxu0 0.0
    %1185 = vmatprep.subr.mxu0 0.0
    %1186 = vmatpush2.xpose.msra.mxu0 0.0
    %1187 = vmatprep.subr.mxu0 0.0
    %1188 = vmatpush2.xpose.msra.mxu0 0.0
    %1189 = vmatprep.subr.mxu0 0.0
    %1190 = vmatpush2.xpose.msra.mxu0 0.0
    %1191 = vmatprep.subr.mxu0 0.0
    %1192 = vmatpush2.xpose.msra.mxu0 0.0
    %1193 = vmatprep.subr.mxu0 0.0
    %1194 = vmatpush2.xpose.msra.mxu0 0.0
    %1195 = vmatprep.subr.mxu0 0.0
    %1196 = vmatpush2.xpose.msra.mxu0 0.0
    %1197 = vmatprep.mubr.f32.mxu0 0.0
    %1198 = vmatmul.mubr.f32.gmra.mxu0 %v605
    %v1199 = vpop.f32.mrf.mxu0
    %v1200 = vadd.f32 0.0, %v1199
    %v1201 = vpop.f32.mrf.mxu0
    %1202 = vmatprep.mubr.f32.mxu0 0.0
    %1203 = vmatmul.mubr.f32.gmra.mxu0 %v609
    %v1204 = vpop.f32.mrf.mxu0
    %v1205 = vadd.f32 0.0, %v1204
    %v1206 = vpop.f32.mrf.mxu0
    %1207 = vdwg.mxu0
    %v1208 = vsel %vm1025, %v1200, -inf
    %1209 = vmax.xlane.f32.xlu0 %v1208
    %v1210 = vpop.xlane.xlu0 %1209
    %v1211 = vsel %vm1025, %v1205, -inf
    %1212 = vmax.xlane.f32.xlu0 %v1211
    %v1213 = vpop.xlane.xlu0 %1212
    %v1214 = vsub.f32 %v1200, %v1210
    %v1215 = vsub.f32 %v1205, %v1213
    %v1216 = vmul.f32 %v1214, 1.442695
    %v1217 = vpow.pop %v1216
    %v1218 = vmul.f32 %v1215, 1.442695
    %v1219 = vpow.pop %v1218
    %v1220 = vmul.f32 %v1217, %v60
    %v1221 = vmul.f32 %v1219, %v61
    %v1222 = vsel %vm1025, %v1220, 0.0
    %1223 = vadd.xlane.f32.xlu0 %v1222
    %v1224 = vpop.xlane.xlu0 %1223
    %v1225 = vsel %vm1025, %v1221, 0.0
    %1226 = vadd.xlane.f32.xlu0 %v1225
    %v1227 = vpop.xlane.xlu0 %1226
    %v1228 = vmax.f32 %v1224, 1e-16
    %v1229 = vmax.f32 %v1227, 1e-16
    %v1230 = vrcp.pop %v1228
    %v1231 = vrcp.pop %v1229
    %v1232 = vmul.f32 %v1220, %v1230
    %v1233 = vmul.f32 %v1221, %v1231
    %v1235 = vsel %vm1025, %v1232, 0
    %v1238 = vsel %vm1025, %v1233, 0
    %1240 = vmatprep.subr.mxu0 0.0
    %1241 = vmatpush1.msra.mxu0 0.0
    %1242 = vmatprep.subr.mxu0 0.0
    %1243 = vmatpush1.msra.mxu0 0.0
    %1244 = vmatprep.subr.mxu0 0.0
    %1245 = vmatpush1.msra.mxu0 0.0
    %1246 = vmatprep.subr.mxu0 0.0
    %1247 = vmatpush1.msra.mxu0 0.0
    %1248 = vmatprep.subr.mxu0 0.0
    %1249 = vmatpush1.msra.mxu0 0.0
    %1250 = vmatprep.subr.mxu0 0.0
    %1251 = vmatpush1.msra.mxu0 0.0
    %1252 = vmatprep.subr.mxu0 0.0
    %1253 = vmatpush1.msra.mxu0 0.0
    %1254 = vmatprep.subr.mxu0 0.0
    %1255 = vmatpush1.msra.mxu0 0.0
    %1256 = vmatprep.subr.mxu0 0.0
    %1257 = vmatpush1.msra.mxu0 0.0
    %1258 = vmatprep.subr.mxu0 0.0
    %1259 = vmatpush1.msra.mxu0 0.0
    %1260 = vmatprep.subr.mxu0 0.0
    %1261 = vmatpush1.msra.mxu0 0.0
    %1262 = vmatprep.subr.mxu0 0.0
    %1263 = vmatpush1.msra.mxu0 0.0
    %1264 = vmatprep.subr.mxu0 0.0
    %1265 = vmatpush1.msra.mxu0 0.0
    %1266 = vmatprep.subr.mxu0 0.0
    %1267 = vmatpush1.msra.mxu0 0.0
    %1268 = vmatprep.subr.mxu0 0.0
    %1269 = vmatpush1.msra.mxu0 %v652
    %1270 = vmatprep.subr.mxu0 0.0
    %1271 = vmatpush1.msra.mxu0 %v648
    %1272 = vmatprep.subr.mxu0 0.0
    %1273 = vmatpush2.msra.mxu0 0.0
    %1274 = vmatprep.subr.mxu0 0.0
    %1275 = vmatpush2.msra.mxu0 0.0
    %1276 = vmatprep.subr.mxu0 0.0
    %1277 = vmatpush2.msra.mxu0 0.0
    %1278 = vmatprep.subr.mxu0 0.0
    %1279 = vmatpush2.msra.mxu0 0.0
    %1280 = vmatprep.subr.mxu0 0.0
    %1281 = vmatpush2.msra.mxu0 0.0
    %1282 = vmatprep.subr.mxu0 0.0
    %1283 = vmatpush2.msra.mxu0 0.0
    %1284 = vmatprep.subr.mxu0 0.0
    %1285 = vmatpush2.msra.mxu0 0.0
    %1286 = vmatprep.subr.mxu0 0.0
    %1287 = vmatpush2.msra.mxu0 0.0
    %1288 = vmatprep.subr.mxu0 0.0
    %1289 = vmatpush2.msra.mxu0 0.0
    %1290 = vmatprep.subr.mxu0 0.0
    %1291 = vmatpush2.msra.mxu0 0.0
    %1292 = vmatprep.subr.mxu0 0.0
    %1293 = vmatpush2.msra.mxu0 0.0
    %1294 = vmatprep.subr.mxu0 0.0
    %1295 = vmatpush2.msra.mxu0 0.0
    %1296 = vmatprep.subr.mxu0 0.0
    %1297 = vmatpush2.msra.mxu0 0.0
    %1298 = vmatprep.subr.mxu0 0.0
    %1299 = vmatpush2.msra.mxu0 0.0
    %1300 = vmatprep.subr.mxu0 0.0
    %1301 = vmatpush2.msra.mxu0 0.0
    %1302 = vmatprep.subr.mxu0 0.0
    %1303 = vmatpush2.msra.mxu0 0.0
    %1304 = vmatprep.mubr.f32.mxu0 0.0
    %1305 = vmatmul.mubr.f32.gmra.mxu0 %v1235
    %v1306 = vpop.f32.mrf.mxu0
    %v1307 = vadd.f32 %v650, %v1306
    %v1308 = vpop.f32.mrf.mxu0
    %1309 = vmatprep.mubr.f32.mxu0 0.0
    %1310 = vmatmul.mubr.f32.gmra.mxu0 %v1238
    %v1311 = vpop.f32.mrf.mxu0
    %v1312 = vadd.f32 %v654, %v1311
    %v1313 = vpop.f32.mrf.mxu0
    %1314 = vdwg.mxu0
    %v1315 = vadd.f32 %v1125, %v1130
    %v1316 = vrot.slane %v1315, 4
    %v1317 = vadd.f32 %v1315, %v1316
    %v1318 = vrot.slane %v1317, 2
    %v1319 = vadd.f32 %v1317, %v1318
    %v1320 = vrot.slane %v1319, 1
    %v1321 = vadd.f32 %v1319, %v1320
    %v1322 = vadd.f32 %v1307, %v1312
    %v1323 = vrot.slane %v1322, 4
    %v1324 = vadd.f32 %v1322, %v1323
    %v1325 = vrot.slane %v1324, 2
    %v1326 = vadd.f32 %v1324, %v1325
    %v1327 = vrot.slane %v1326, 1
    %v1328 = vadd.f32 %v1326, %v1327
    %v1329 = vrcp.pop 16.0
    %v1330 = vmul.f32 %v1321, %v1329
    %v1331 = vmul.f32 %v1328, %v1329
    %v1332 = vmul.f32 %v64, %v1330
    %v1333 = vmul.f32 %v65, %v1331
    %v1334 = vlaneseq
    %v1335 = vshrl.u32 %v1334, 7
    %v1336 = vsub.s32 6, %v1335
    %v1337 = vrot.slane %v1332, %v1336
    %v1338 = vlaneseq
    %v1339 = vshrl.u32 %v1338, 7
    %v1340 = vsub.s32 6, %v1339
    %v1341 = vrot.slane %v1333, %v1340
    %v1342 = vsub.f32 %v1125, %v1337
    %v1343 = vsub.f32 %v1307, %v1341
    %v1344 = vsub.f32 %v1130, %v1337
    %v1345 = vsub.f32 %v1312, %v1341
    %v1346 = vmul.f32 %v1342, %v1342
    %v1347 = vmul.f32 %v1343, %v1343
    %v1348 = vmul.f32 %v1344, %v1344
    %v1349 = vmul.f32 %v1345, %v1345
    %v1350 = vadd.f32 %v1346, %v1348
    %v1351 = vrot.slane %v1350, 4
    %v1352 = vadd.f32 %v1350, %v1351
    %v1353 = vrot.slane %v1352, 2
    %v1354 = vadd.f32 %v1352, %v1353
    %v1355 = vrot.slane %v1354, 1
    %v1356 = vadd.f32 %v1354, %v1355
    %v1357 = vadd.f32 %v1347, %v1349
    %v1358 = vrot.slane %v1357, 4
    %v1359 = vadd.f32 %v1357, %v1358
    %v1360 = vrot.slane %v1359, 2
    %v1361 = vadd.f32 %v1359, %v1360
    %v1362 = vrot.slane %v1361, 1
    %v1363 = vadd.f32 %v1361, %v1362
    %v1364 = vmul.f32 %v1356, %v1329
    %v1365 = vmul.f32 %v1363, %v1329
    %v1366 = vlaneseq
    %v1367 = vshrl.u32 %v1366, 7
    %v1368 = vsub.s32 4, %v1367
    %v1369 = vrot.slane %v64, %v1368
    %v1370 = vlaneseq
    %v1371 = vshrl.u32 %v1370, 7
    %v1372 = vsub.s32 4, %v1371
    %v1373 = vrot.slane %v65, %v1372
    %v1374 = vmul.f32 %v1369, %v1342
    %v1375 = vmul.f32 %v1373, %v1343
    %v1376 = vmul.f32 %v1369, %v1344
    %v1377 = vmul.f32 %v1373, %v1345
    %v1378 = vadd.f32 %v1364, 1e-05
    %v1379 = vadd.f32 %v1365, 1e-05
    %v1380 = vrsqrt.pop %v1378
    %v1381 = vrsqrt.pop %v1379
    %v1382 = vmul.f32 %v1374, %v1380
    %v1383 = vmul.f32 %v1375, %v1381
    %v1384 = vmul.f32 %v1376, %v1380
    %v1385 = vmul.f32 %v1377, %v1381
    %v1386 = vlaneseq
    %v1387 = vshrl.u32 %v1386, 7
    %v1388 = vsub.s32 5, %v1387
    %v1389 = vrot.slane %v64, %v1388
    %v1390 = vlaneseq
    %v1391 = vshrl.u32 %v1390, 7
    %v1392 = vsub.s32 5, %v1391
    %v1393 = vrot.slane %v65, %v1392
    %v1394 = vadd.f32 %v1382, %v1389
    %v1395 = vadd.f32 %v1383, %v1393
    %v1396 = vadd.f32 %v1384, %v1389
    %v1397 = vadd.f32 %v1385, %v1393
    %vm1398 = vcmp.gt.f32.partialorder %v1394, 20.0
    %vm1399 = vcmp.gt.f32.partialorder %v1395, 20.0
    %vm1400 = vcmp.gt.f32.partialorder %v1396, 20.0
    %vm1401 = vcmp.gt.f32.partialorder %v1397, 20.0
    %v1402 = vmin.f32 %v1394, 20.0
    %v1403 = vmin.f32 %v1395, 20.0
    %v1404 = vmin.f32 %v1396, 20.0
    %v1405 = vmin.f32 %v1397, 20.0
    %v1406 = vmul.f32 %v1402, 1.442695
    %v1407 = vpow.pop %v1406
    %v1408 = vmul.f32 %v1403, 1.442695
    %v1409 = vpow.pop %v1408
    %v1410 = vmul.f32 %v1404, 1.442695
    %v1411 = vpow.pop %v1410
    %v1412 = vmul.f32 %v1405, 1.442695
    %v1413 = vpow.pop %v1412
    %v1414 = vadd.f32 %v1407, 1.0
    %v1415 = vlog2.pop %v1414
    %v1416 = vmul.f32 %v1415, 0.6931472
    %v1417 = vmul.f32 -0.5, %v1407
    %v1418 = vadd.f32 %v1417, 1.0
    %v1419 = vmul.f32 %v1418, %v1407
    %v1420 = vand.u32 2147483647, %v1407
    %vm1421 = vcmp.lt.f32.partialorder %v1420, 0.0004427343
    %v1422 = vsel %vm1421, %v1419, %v1416
    %v1423 = vadd.f32 %v1409, 1.0
    %v1424 = vlog2.pop %v1423
    %v1425 = vmul.f32 %v1424, 0.6931472
    %v1426 = vmul.f32 -0.5, %v1409
    %v1427 = vadd.f32 %v1426, 1.0
    %v1428 = vmul.f32 %v1427, %v1409
    %v1429 = vand.u32 2147483647, %v1409
    %vm1430 = vcmp.lt.f32.partialorder %v1429, 0.0004427343
    %v1431 = vsel %vm1430, %v1428, %v1425
    %v1432 = vadd.f32 %v1411, 1.0
    %v1433 = vlog2.pop %v1432
    %v1434 = vmul.f32 %v1433, 0.6931472
    %v1435 = vmul.f32 -0.5, %v1411
    %v1436 = vadd.f32 %v1435, 1.0
    %v1437 = vmul.f32 %v1436, %v1411
    %v1438 = vand.u32 2147483647, %v1411
    %vm1439 = vcmp.lt.f32.partialorder %v1438, 0.0004427343
    %v1440 = vsel %vm1439, %v1437, %v1434
    %v1441 = vadd.f32 %v1413, 1.0
    %v1442 = vlog2.pop %v1441
    %v1443 = vmul.f32 %v1442, 0.6931472
    %v1444 = vmul.f32 -0.5, %v1413
    %v1445 = vadd.f32 %v1444, 1.0
    %v1446 = vmul.f32 %v1445, %v1413
    %v1447 = vand.u32 2147483647, %v1413
    %vm1448 = vcmp.lt.f32.partialorder %v1447, 0.0004427343
    %v1449 = vsel %vm1448, %v1446, %v1443
    %v1450 = vsel %vm1398, %v1394, %v1422
    %v1451 = vsel %vm1399, %v1395, %v1431
    %v1452 = vsel %vm1400, %v1396, %v1440
    %v1453 = vsel %vm1401, %v1397, %v1449
    %v1454 = vtanh.pop %v1450
    %v1455 = vtanh.pop %v1451
    %v1456 = vtanh.pop %v1452
    %v1457 = vtanh.pop %v1453
    %v1458 = vmul.f32 %v1394, %v1454
    %v1459 = vmul.f32 %v1395, %v1455
    %v1460 = vmul.f32 %v1396, %v1456
    %v1461 = vmul.f32 %v1397, %v1457
    %v1462 = vpack.c.bf16 %v1460, %v1458
    %v1463 = vpack.c.bf16 %v1461, %v1459
    %v1464 = vld [vmem:[#allocation7 + $0x320] sm:$0xff]
    %v1465 = vld [vmem:[#allocation7 + $0x328] sm:$0xff]
    %v1466 = vld [vmem:[#allocation7 + $0x330] sm:$0xff]
    %v1467 = vld [vmem:[#allocation7 + $0x338] sm:$0xff]
    %v1468 = vld [vmem:[#allocation7 + $0x340] sm:$0xff]
    %v1469 = vld [vmem:[#allocation7 + $0x348] sm:$0xff]
    %v1470 = vld [vmem:[#allocation7 + $0x350] sm:$0xff]
    %v1471 = vld [vmem:[#allocation7 + $0x358] sm:$0xff]
    %v1472 = vld [vmem:[#allocation7 + $0x360] sm:$0xff]
    %v1473 = vld [vmem:[#allocation7 + $0x368] sm:$0xff]
    %v1474 = vld [vmem:[#allocation7 + $0x370] sm:$0xff]
    %v1475 = vld [vmem:[#allocation7 + $0x378] sm:$0xff]
    %v1476 = vld [vmem:[#allocation7 + $0x380] sm:$0xff]
    %v1477 = vld [vmem:[#allocation7 + $0x388] sm:$0xff]
    %v1478 = vld [vmem:[#allocation7 + $0x390] sm:$0xff]
    %v1479 = vld [vmem:[#allocation7 + $0x398] sm:$0xff]
    %v1480 = vld [vmem:[#allocation7 + $0x3a0] sm:$0xff]
    %v1481 = vld [vmem:[#allocation7 + $0x3a8] sm:$0xff]
    %v1482 = vld [vmem:[#allocation7 + $0x3b0] sm:$0xff]
    %v1483 = vld [vmem:[#allocation7 + $0x3b8] sm:$0xff]
    %v1484 = vld [vmem:[#allocation7 + $0x3c0] sm:$0xff]
    %v1485 = vld [vmem:[#allocation7 + $0x3c8] sm:$0xff]
    %v1486 = vld [vmem:[#allocation7 + $0x3d0] sm:$0xff]
    %v1487 = vld [vmem:[#allocation7 + $0x3d8] sm:$0xff]
    %v1488 = vld [vmem:[#allocation7 + $0x3e0] sm:$0xff]
    %v1489 = vld [vmem:[#allocation7 + $0x3e8] sm:$0xff]
    %v1490 = vld [vmem:[#allocation7 + $0x3f0] sm:$0xff]
    %v1491 = vld [vmem:[#allocation7 + $0x3f8] sm:$0xff]
    %v1492 = vld [vmem:[#allocation7 + $0x400] sm:$0xff]
    %v1493 = vld [vmem:[#allocation7 + $0x408] sm:$0xff]
    %v1494 = vld [vmem:[#allocation7 + $0x410] sm:$0xff]
    %v1495 = vld [vmem:[#allocation7 + $0x418] sm:$0xff]
    %v1496 = vld [vmem:[#allocation7 + $0x420] sm:$0xff]
    %v1497 = vld [vmem:[#allocation7 + $0x428] sm:$0xff]
    %v1498 = vld [vmem:[#allocation7 + $0x430] sm:$0xff]
    %v1499 = vld [vmem:[#allocation7 + $0x438] sm:$0xff]
    %v1500 = vld [vmem:[#allocation7 + $0x440] sm:$0xff]
    %v1501 = vld [vmem:[#allocation7 + $0x448] sm:$0xff]
    %v1502 = vld [vmem:[#allocation7 + $0x450] sm:$0xff]
    %v1503 = vld [vmem:[#allocation7 + $0x458] sm:$0xff]
    %v1504 = vld [vmem:[#allocation7 + $0x460] sm:$0xff]
    %v1505 = vld [vmem:[#allocation7 + $0x468] sm:$0xff]
    %v1506 = vld [vmem:[#allocation7 + $0x470] sm:$0xff]
    %v1507 = vld [vmem:[#allocation7 + $0x478] sm:$0xff]
    %v1508 = vld [vmem:[#allocation7 + $0x480] sm:$0xff]
    %v1509 = vld [vmem:[#allocation7 + $0x488] sm:$0xff]
    %v1510 = vld [vmem:[#allocation7 + $0x490] sm:$0xff]
    %v1511 = vld [vmem:[#allocation7 + $0x498] sm:$0xff]
    %v1512 = vld [vmem:[#allocation7 + $0x4a0] sm:$0xff]
    %v1513 = vld [vmem:[#allocation7 + $0x4a8] sm:$0xff]
    %v1514 = vld [vmem:[#allocation7 + $0x4b0] sm:$0xff]
    %v1515 = vld [vmem:[#allocation7 + $0x4b8] sm:$0xff]
    %v1516 = vld [vmem:[#allocation7 + $0x4c0] sm:$0xff]
    %v1517 = vld [vmem:[#allocation7 + $0x4c8] sm:$0xff]
    %v1518 = vld [vmem:[#allocation7 + $0x4d0] sm:$0xff]
    %v1519 = vld [vmem:[#allocation7 + $0x4d8] sm:$0xff]
    %v1520 = vld [vmem:[#allocation7 + $0x4e0] sm:$0xff]
    %v1521 = vld [vmem:[#allocation7 + $0x4e8] sm:$0xff]
    %v1522 = vld [vmem:[#allocation7 + $0x4f0] sm:$0xff]
    %v1523 = vld [vmem:[#allocation7 + $0x4f8] sm:$0xff]
    %v1524 = vld [vmem:[#allocation7 + $0x500] sm:$0xff]
    %v1525 = vld [vmem:[#allocation7 + $0x508] sm:$0xff]
    %v1526 = vld [vmem:[#allocation7 + $0x510] sm:$0xff]
    %v1527 = vld [vmem:[#allocation7 + $0x518] sm:$0xff]
    %v1528 = vlaneseq
    %v1529 = vshrl.u32 %v1528, 7
    %v1530 = vsub.s32 3, %v1529
    %v1531 = vrot.slane %v64, %v1530
    %v1532 = vlaneseq
    %v1533 = vshrl.u32 %v1532, 7
    %v1534 = vsub.s32 3, %v1533
    %v1535 = vrot.slane %v65, %v1534
    %v1536 = vlaneseq
    %v1537 = vshrl.u32 %v1536, 7
    %v1538 = vsub.s32 3, %v1537
    %v1539 = vrot.slane %v66, %v1538
    %v1540 = vlaneseq
    %v1541 = vshrl.u32 %v1540, 7
    %v1542 = vsub.s32 3, %v1541
    %v1543 = vrot.slane %v67, %v1542
    %v1608 = vunpack.c.l.b16 %v1464
    %v1609 = vunpack.c.h.b16 %v1464
    %v1610 = vunpack.c.l.b16 %v1465
    %v1611 = vunpack.c.h.b16 %v1465
    %v1612 = vunpack.c.l.b16 %v1466
    %v1613 = vunpack.c.h.b16 %v1466
    %v1614 = vunpack.c.l.b16 %v1467
    %v1615 = vunpack.c.h.b16 %v1467
    %v1616 = vunpack.c.l.b16 %v1468
    %v1617 = vunpack.c.h.b16 %v1468
    %v1618 = vunpack.c.l.b16 %v1469
    %v1619 = vunpack.c.h.b16 %v1469
    %v1620 = vunpack.c.l.b16 %v1470
    %v1621 = vunpack.c.h.b16 %v1470
    %v1622 = vunpack.c.l.b16 %v1471
    %v1623 = vunpack.c.h.b16 %v1471
    %v1624 = vunpack.c.l.b16 %v1472
    %v1625 = vunpack.c.h.b16 %v1472
    %v1626 = vunpack.c.l.b16 %v1473
    %v1627 = vunpack.c.h.b16 %v1473
    %v1628 = vunpack.c.l.b16 %v1474
    %v1629 = vunpack.c.h.b16 %v1474
    %v1630 = vunpack.c.l.b16 %v1475
    %v1631 = vunpack.c.h.b16 %v1475
    %v1632 = vunpack.c.l.b16 %v1476
    %v1633 = vunpack.c.h.b16 %v1476
    %v1634 = vunpack.c.l.b16 %v1477
    %v1635 = vunpack.c.h.b16 %v1477
    %v1636 = vunpack.c.l.b16 %v1478
    %v1637 = vunpack.c.h.b16 %v1478
    %v1638 = vunpack.c.l.b16 %v1479
    %v1639 = vunpack.c.h.b16 %v1479
    %v1640 = vunpack.c.l.b16 %v1480
    %v1641 = vunpack.c.h.b16 %v1480
    %v1642 = vunpack.c.l.b16 %v1481
    %v1643 = vunpack.c.h.b16 %v1481
    %v1644 = vunpack.c.l.b16 %v1482
    %v1645 = vunpack.c.h.b16 %v1482
    %v1646 = vunpack.c.l.b16 %v1483
    %v1647 = vunpack.c.h.b16 %v1483
    %v1648 = vunpack.c.l.b16 %v1484
    %v1649 = vunpack.c.h.b16 %v1484
    %v1650 = vunpack.c.l.b16 %v1485
    %v1651 = vunpack.c.h.b16 %v1485
    %v1652 = vunpack.c.l.b16 %v1486
    %v1653 = vunpack.c.h.b16 %v1486
    %v1654 = vunpack.c.l.b16 %v1487
    %v1655 = vunpack.c.h.b16 %v1487
    %v1656 = vunpack.c.l.b16 %v1488
    %v1657 = vunpack.c.h.b16 %v1488
    %v1658 = vunpack.c.l.b16 %v1489
    %v1659 = vunpack.c.h.b16 %v1489
    %v1660 = vunpack.c.l.b16 %v1490
    %v1661 = vunpack.c.h.b16 %v1490
    %v1662 = vunpack.c.l.b16 %v1491
    %v1663 = vunpack.c.h.b16 %v1491
    %v1664 = vunpack.c.l.b16 %v1492
    %v1665 = vunpack.c.h.b16 %v1492
    %v1666 = vunpack.c.l.b16 %v1493
    %v1667 = vunpack.c.h.b16 %v1493
    %v1668 = vunpack.c.l.b16 %v1494
    %v1669 = vunpack.c.h.b16 %v1494
    %v1670 = vunpack.c.l.b16 %v1495
    %v1671 = vunpack.c.h.b16 %v1495
    %v1672 = vunpack.c.l.b16 %v1496
    %v1673 = vunpack.c.h.b16 %v1496
    %v1674 = vunpack.c.l.b16 %v1497
    %v1675 = vunpack.c.h.b16 %v1497
    %v1676 = vunpack.c.l.b16 %v1498
    %v1677 = vunpack.c.h.b16 %v1498
    %v1678 = vunpack.c.l.b16 %v1499
    %v1679 = vunpack.c.h.b16 %v1499
    %v1680 = vunpack.c.l.b16 %v1500
    %v1681 = vunpack.c.h.b16 %v1500
    %v1682 = vunpack.c.l.b16 %v1501
    %v1683 = vunpack.c.h.b16 %v1501
    %v1684 = vunpack.c.l.b16 %v1502
    %v1685 = vunpack.c.h.b16 %v1502
    %v1686 = vunpack.c.l.b16 %v1503
    %v1687 = vunpack.c.h.b16 %v1503
    %v1688 = vunpack.c.l.b16 %v1504
    %v1689 = vunpack.c.h.b16 %v1504
    %v1690 = vunpack.c.l.b16 %v1505
    %v1691 = vunpack.c.h.b16 %v1505
    %v1692 = vunpack.c.l.b16 %v1506
    %v1693 = vunpack.c.h.b16 %v1506
    %v1694 = vunpack.c.l.b16 %v1507
    %v1695 = vunpack.c.h.b16 %v1507
    %v1696 = vunpack.c.l.b16 %v1508
    %v1697 = vunpack.c.h.b16 %v1508
    %v1698 = vunpack.c.l.b16 %v1509
    %v1699 = vunpack.c.h.b16 %v1509
    %v1700 = vunpack.c.l.b16 %v1510
    %v1701 = vunpack.c.h.b16 %v1510
    %v1702 = vunpack.c.l.b16 %v1511
    %v1703 = vunpack.c.h.b16 %v1511
    %v1704 = vunpack.c.l.b16 %v1512
    %v1705 = vunpack.c.h.b16 %v1512
    %v1706 = vunpack.c.l.b16 %v1513
    %v1707 = vunpack.c.h.b16 %v1513
    %v1708 = vunpack.c.l.b16 %v1514
    %v1709 = vunpack.c.h.b16 %v1514
    %v1710 = vunpack.c.l.b16 %v1515
    %v1711 = vunpack.c.h.b16 %v1515
    %v1712 = vunpack.c.l.b16 %v1516
    %v1713 = vunpack.c.h.b16 %v1516
    %v1714 = vunpack.c.l.b16 %v1517
    %v1715 = vunpack.c.h.b16 %v1517
    %v1716 = vunpack.c.l.b16 %v1518
    %v1717 = vunpack.c.h.b16 %v1518
    %v1718 = vunpack.c.l.b16 %v1519
    %v1719 = vunpack.c.h.b16 %v1519
    %v1720 = vunpack.c.l.b16 %v1520
    %v1721 = vunpack.c.h.b16 %v1520
    %v1722 = vunpack.c.l.b16 %v1521
    %v1723 = vunpack.c.h.b16 %v1521
    %v1724 = vunpack.c.l.b16 %v1522
    %v1725 = vunpack.c.h.b16 %v1522
    %v1726 = vunpack.c.l.b16 %v1523
    %v1727 = vunpack.c.h.b16 %v1523
    %v1728 = vunpack.c.l.b16 %v1524
    %v1729 = vunpack.c.h.b16 %v1524
    %v1730 = vunpack.c.l.b16 %v1525
    %v1731 = vunpack.c.h.b16 %v1525
    %v1732 = vunpack.c.l.b16 %v1526
    %v1733 = vunpack.c.h.b16 %v1526
    %v1734 = vunpack.c.l.b16 %v1527
    %v1735 = vunpack.c.h.b16 %v1527
    %v1736 = vpack.c.b16 %v1612, %v1608
    %v1737 = vpack.c.b16 %v1613, %v1609
    %v1738 = vpack.c.b16 %v1614, %v1610
    %v1739 = vpack.c.b16 %v1615, %v1611
    %v1740 = vpack.c.b16 %v1620, %v1616
    %v1741 = vpack.c.b16 %v1621, %v1617
    %v1742 = vpack.c.b16 %v1622, %v1618
    %v1743 = vpack.c.b16 %v1623, %v1619
    %v1744 = vpack.c.b16 %v1628, %v1624
    %v1745 = vpack.c.b16 %v1629, %v1625
    %v1746 = vpack.c.b16 %v1630, %v1626
    %v1747 = vpack.c.b16 %v1631, %v1627
    %v1748 = vpack.c.b16 %v1636, %v1632
    %v1749 = vpack.c.b16 %v1637, %v1633
    %v1750 = vpack.c.b16 %v1638, %v1634
    %v1751 = vpack.c.b16 %v1639, %v1635
    %v1752 = vpack.c.b16 %v1644, %v1640
    %v1753 = vpack.c.b16 %v1645, %v1641
    %v1754 = vpack.c.b16 %v1646, %v1642
    %v1755 = vpack.c.b16 %v1647, %v1643
    %v1756 = vpack.c.b16 %v1652, %v1648
    %v1757 = vpack.c.b16 %v1653, %v1649
    %v1758 = vpack.c.b16 %v1654, %v1650
    %v1759 = vpack.c.b16 %v1655, %v1651
    %v1760 = vpack.c.b16 %v1660, %v1656
    %v1761 = vpack.c.b16 %v1661, %v1657
    %v1762 = vpack.c.b16 %v1662, %v1658
    %v1763 = vpack.c.b16 %v1663, %v1659
    %v1764 = vpack.c.b16 %v1668, %v1664
    %v1765 = vpack.c.b16 %v1669, %v1665
    %v1766 = vpack.c.b16 %v1670, %v1666
    %v1767 = vpack.c.b16 %v1671, %v1667
    %v1768 = vpack.c.b16 %v1676, %v1672
    %v1769 = vpack.c.b16 %v1677, %v1673
    %v1770 = vpack.c.b16 %v1678, %v1674
    %v1771 = vpack.c.b16 %v1679, %v1675
    %v1772 = vpack.c.b16 %v1684, %v1680
    %v1773 = vpack.c.b16 %v1685, %v1681
    %v1774 = vpack.c.b16 %v1686, %v1682
    %v1775 = vpack.c.b16 %v1687, %v1683
    %v1776 = vpack.c.b16 %v1692, %v1688
    %v1777 = vpack.c.b16 %v1693, %v1689
    %v1778 = vpack.c.b16 %v1694, %v1690
    %v1779 = vpack.c.b16 %v1695, %v1691
    %v1780 = vpack.c.b16 %v1700, %v1696
    %v1781 = vpack.c.b16 %v1701, %v1697
    %v1782 = vpack.c.b16 %v1702, %v1698
    %v1783 = vpack.c.b16 %v1703, %v1699
    %v1784 = vpack.c.b16 %v1708, %v1704
    %v1785 = vpack.c.b16 %v1709, %v1705
    %v1786 = vpack.c.b16 %v1710, %v1706
    %v1787 = vpack.c.b16 %v1711, %v1707
    %v1788 = vpack.c.b16 %v1716, %v1712
    %v1789 = vpack.c.b16 %v1717, %v1713
    %v1790 = vpack.c.b16 %v1718, %v1714
    %v1791 = vpack.c.b16 %v1719, %v1715
    %v1792 = vpack.c.b16 %v1724, %v1720
    %v1793 = vpack.c.b16 %v1725, %v1721
    %v1794 = vpack.c.b16 %v1726, %v1722
    %v1795 = vpack.c.b16 %v1727, %v1723
    %v1796 = vpack.c.b16 %v1732, %v1728
    %v1797 = vpack.c.b16 %v1733, %v1729
    %v1798 = vpack.c.b16 %v1734, %v1730
    %v1799 = vpack.c.b16 %v1735, %v1731
    %1864 = vmatprep.subr.bf16.mxu0 %v1765
    %1865 = vmatpush1.bf16.msra.mxu0 %v1764
    %1866 = vmatprep.subr.bf16.mxu0 %v1761
    %1867 = vmatpush1.bf16.msra.mxu0 %v1760
    %1868 = vmatprep.subr.bf16.mxu0 %v1757
    %1869 = vmatpush1.bf16.msra.mxu0 %v1756
    %1870 = vmatprep.subr.bf16.mxu0 %v1753
    %1871 = vmatpush1.bf16.msra.mxu0 %v1752
    %1872 = vmatprep.subr.bf16.mxu0 %v1749
    %1873 = vmatpush1.bf16.msra.mxu0 %v1748
    %1874 = vmatprep.subr.bf16.mxu0 %v1745
    %1875 = vmatpush1.bf16.msra.mxu0 %v1744
    %1876 = vmatprep.subr.bf16.mxu0 %v1741
    %1877 = vmatpush1.bf16.msra.mxu0 %v1740
    %1878 = vmatprep.subr.bf16.mxu0 %v1737
    %1879 = vmatpush1.bf16.msra.mxu0 %v1736
    %1880 = vmatprep.subr.bf16.mxu0 %v1797
    %1881 = vmatpush2.bf16.msra.mxu0 %v1796
    %1882 = vmatprep.subr.bf16.mxu0 %v1793
    %1883 = vmatpush2.bf16.msra.mxu0 %v1792
    %1884 = vmatprep.subr.bf16.mxu0 %v1789
    %1885 = vmatpush2.bf16.msra.mxu0 %v1788
    %1886 = vmatprep.subr.bf16.mxu0 %v1785
    %1887 = vmatpush2.bf16.msra.mxu0 %v1784
    %1888 = vmatprep.subr.bf16.mxu0 %v1781
    %1889 = vmatpush2.bf16.msra.mxu0 %v1780
    %1890 = vmatprep.subr.bf16.mxu0 %v1777
    %1891 = vmatpush2.bf16.msra.mxu0 %v1776
    %1892 = vmatprep.subr.bf16.mxu0 %v1773
    %1893 = vmatpush2.bf16.msra.mxu0 %v1772
    %1894 = vmatprep.subr.bf16.mxu0 %v1769
    %1895 = vmatpush2.bf16.msra.mxu0 %v1768
    %1896 = vmatprep.mubr.bf16.mxu0 %v1463
    %1897 = vmatmul.mubr.bf16.gmra.mxu0 %v1462
    %v1898 = vpop.f32.mrf.mxu0
    %v1899 = vadd.f32 %v1531, %v1898
    %v1900 = vpop.f32.mrf.mxu0
    %v1901 = vadd.f32 %v1535, %v1900
    %v1902 = vpop.f32.mrf.mxu0
    %v1903 = vadd.f32 %v1531, %v1902
    %v1904 = vpop.f32.mrf.mxu0
    %v1905 = vadd.f32 %v1535, %v1904
    %1906 = vdwg.mxu0
    %1907 = vmatprep.subr.bf16.mxu0 %v1767
    %1908 = vmatpush1.bf16.msra.mxu0 %v1766
    %1909 = vmatprep.subr.bf16.mxu0 %v1763
    %1910 = vmatpush1.bf16.msra.mxu0 %v1762
    %1911 = vmatprep.subr.bf16.mxu0 %v1759
    %1912 = vmatpush1.bf16.msra.mxu0 %v1758
    %1913 = vmatprep.subr.bf16.mxu0 %v1755
    %1914 = vmatpush1.bf16.msra.mxu0 %v1754
    %1915 = vmatprep.subr.bf16.mxu0 %v1751
    %1916 = vmatpush1.bf16.msra.mxu0 %v1750
    %1917 = vmatprep.subr.bf16.mxu0 %v1747
    %1918 = vmatpush1.bf16.msra.mxu0 %v1746
    %1919 = vmatprep.subr.bf16.mxu0 %v1743
    %1920 = vmatpush1.bf16.msra.mxu0 %v1742
    %1921 = vmatprep.subr.bf16.mxu0 %v1739
    %1922 = vmatpush1.bf16.msra.mxu0 %v1738
    %1923 = vmatprep.subr.bf16.mxu0 %v1799
    %1924 = vmatpush2.bf16.msra.mxu0 %v1798
    %1925 = vmatprep.subr.bf16.mxu0 %v1795
    %1926 = vmatpush2.bf16.msra.mxu0 %v1794
    %1927 = vmatprep.subr.bf16.mxu0 %v1791
    %1928 = vmatpush2.bf16.msra.mxu0 %v1790
    %1929 = vmatprep.subr.bf16.mxu0 %v1787
    %1930 = vmatpush2.bf16.msra.mxu0 %v1786
    %1931 = vmatprep.subr.bf16.mxu0 %v1783
    %1932 = vmatpush2.bf16.msra.mxu0 %v1782
    %1933 = vmatprep.subr.bf16.mxu0 %v1779
    %1934 = vmatpush2.bf16.msra.mxu0 %v1778
    %1935 = vmatprep.subr.bf16.mxu0 %v1775
    %1936 = vmatpush2.bf16.msra.mxu0 %v1774
    %1937 = vmatprep.subr.bf16.mxu0 %v1771
    %1938 = vmatpush2.bf16.msra.mxu0 %v1770
    %1939 = vmatprep.mubr.bf16.mxu0 %v1463
    %1940 = vmatmul.mubr.bf16.gmra.mxu0 %v1462
    %v1941 = vpop.f32.mrf.mxu0
    %v1942 = vadd.f32 %v1539, %v1941
    %v1943 = vpop.f32.mrf.mxu0
    %v1944 = vadd.f32 %v1543, %v1943
    %v1945 = vpop.f32.mrf.mxu0
    %v1946 = vadd.f32 %v1539, %v1945
    %v1947 = vpop.f32.mrf.mxu0
    %v1948 = vadd.f32 %v1543, %v1947
    %1949 = vdwg.mxu0
    %1950 = vmatprep.subr.mxu0 0.0
    %1951 = vmatpush1.xpose.msra.mxu0 0.0
    %1952 = vmatprep.subr.mxu0 0.0
    %1953 = vmatpush1.xpose.msra.mxu0 0.0
    %1954 = vmatprep.subr.mxu0 0.0
    %1955 = vmatpush1.xpose.msra.mxu0 0.0
    %1956 = vmatprep.subr.mxu0 0.0
    %1957 = vmatpush1.xpose.msra.mxu0 0.0
    %1958 = vmatprep.subr.mxu0 0.0
    %1959 = vmatpush1.xpose.msra.mxu0 0.0
    %1960 = vmatprep.subr.mxu0 0.0
    %1961 = vmatpush1.xpose.msra.mxu0 0.0
    %1962 = vmatprep.subr.mxu0 0.0
    %1963 = vmatpush1.xpose.msra.mxu0 0.0
    %1964 = vmatprep.subr.mxu0 0.0
    %1965 = vmatpush1.xpose.msra.mxu0 0.0
    %1966 = vmatprep.subr.mxu0 0.0
    %1967 = vmatpush1.xpose.msra.mxu0 0.0
    %1968 = vmatprep.subr.mxu0 0.0
    %1969 = vmatpush1.xpose.msra.mxu0 0.0
    %1970 = vmatprep.subr.mxu0 0.0
    %1971 = vmatpush1.xpose.msra.mxu0 0.0
    %1972 = vmatprep.subr.mxu0 0.0
    %1973 = vmatpush1.xpose.msra.mxu0 0.0
    %1974 = vmatprep.subr.mxu0 0.0
    %1975 = vmatpush1.xpose.msra.mxu0 0.0
    %1976 = vmatprep.subr.mxu0 0.0
    %1977 = vmatpush1.xpose.msra.mxu0 0.0
    %1978 = vmatprep.subr.mxu0 0.0
    %1979 = vmatpush1.xpose.msra.mxu0 %v1905
    %1980 = vmatprep.subr.mxu0 0.0
    %1981 = vmatpush1.xpose.msra.mxu0 %v1901
    %1982 = vmatprep.subr.mxu0 0.0
    %1983 = vmatpush2.xpose.msra.mxu0 0.0
    %1984 = vmatprep.subr.mxu0 0.0
    %1985 = vmatpush2.xpose.msra.mxu0 0.0
    %1986 = vmatprep.subr.mxu0 0.0
    %1987 = vmatpush2.xpose.msra.mxu0 0.0
    %1988 = vmatprep.subr.mxu0 0.0
    %1989 = vmatpush2.xpose.msra.mxu0 0.0
    %1990 = vmatprep.subr.mxu0 0.0
    %1991 = vmatpush2.xpose.msra.mxu0 0.0
    %1992 = vmatprep.subr.mxu0 0.0
    %1993 = vmatpush2.xpose.msra.mxu0 0.0
    %1994 = vmatprep.subr.mxu0 0.0
    %1995 = vmatpush2.xpose.msra.mxu0 0.0
    %1996 = vmatprep.subr.mxu0 0.0
    %1997 = vmatpush2.xpose.msra.mxu0 0.0
    %1998 = vmatprep.subr.mxu0 0.0
    %1999 = vmatpush2.xpose.msra.mxu0 0.0
    %2000 = vmatprep.subr.mxu0 0.0
    %2001 = vmatpush2.xpose.msra.mxu0 0.0
    %2002 = vmatprep.subr.mxu0 0.0
    %2003 = vmatpush2.xpose.msra.mxu0 0.0
    %2004 = vmatprep.subr.mxu0 0.0
    %2005 = vmatpush2.xpose.msra.mxu0 0.0
    %2006 = vmatprep.subr.mxu0 0.0
    %2007 = vmatpush2.xpose.msra.mxu0 0.0
    %2008 = vmatprep.subr.mxu0 0.0
    %2009 = vmatpush2.xpose.msra.mxu0 0.0
    %2010 = vmatprep.subr.mxu0 0.0
    %2011 = vmatpush2.xpose.msra.mxu0 0.0
    %2012 = vmatprep.subr.mxu0 0.0
    %2013 = vmatpush2.xpose.msra.mxu0 0.0
    %2014 = vmatprep.mubr.f32.mxu0 0.0
    %2015 = vmatmul.mubr.f32.gmra.mxu0 %v1899
    %v2016 = vpop.f32.mrf.mxu0
    %v2017 = vadd.f32 0.0, %v2016
    %v2018 = vpop.f32.mrf.mxu0
    %2019 = vmatprep.mubr.f32.mxu0 0.0
    %2020 = vmatmul.mubr.f32.gmra.mxu0 %v1903
    %v2021 = vpop.f32.mrf.mxu0
    %v2022 = vadd.f32 0.0, %v2021
    %v2023 = vpop.f32.mrf.mxu0
    %2024 = vdwg.mxu0
    %v2025 = vsel %vm1025, %v2017, -inf
    %2026 = vmax.xlane.f32.xlu0 %v2025
    %v2027 = vpop.xlane.xlu0 %2026
    %v2028 = vsel %vm1025, %v2022, -inf
    %2029 = vmax.xlane.f32.xlu0 %v2028
    %v2030 = vpop.xlane.xlu0 %2029
    %v2031 = vsub.f32 %v2017, %v2027
    %v2032 = vsub.f32 %v2022, %v2030
    %v2033 = vmul.f32 %v2031, 1.442695
    %v2034 = vpow.pop %v2033
    %v2035 = vmul.f32 %v2032, 1.442695
    %v2036 = vpow.pop %v2035
    %v2037 = vmul.f32 %v2034, %v60
    %v2038 = vmul.f32 %v2036, %v61
    %v2039 = vsel %vm1025, %v2037, 0.0
    %2040 = vadd.xlane.f32.xlu0 %v2039
    %v2041 = vpop.xlane.xlu0 %2040
    %v2042 = vsel %vm1025, %v2038, 0.0
    %2043 = vadd.xlane.f32.xlu0 %v2042
    %v2044 = vpop.xlane.xlu0 %2043
    %v2045 = vmax.f32 %v2041, 1e-16
    %v2046 = vmax.f32 %v2044, 1e-16
    %v2047 = vrcp.pop %v2045
    %v2048 = vrcp.pop %v2046
    %v2049 = vmul.f32 %v2037, %v2047
    %v2050 = vmul.f32 %v2038, %v2048
    %v2052 = vsel %vm1025, %v2049, 0
    %v2055 = vsel %vm1025, %v2050, 0
    %2057 = vmatprep.subr.mxu0 0.0
    %2058 = vmatpush1.msra.mxu0 0.0
    %2059 = vmatprep.subr.mxu0 0.0
    %2060 = vmatpush1.msra.mxu0 0.0
    %2061 = vmatprep.subr.mxu0 0.0
    %2062 = vmatpush1.msra.mxu0 0.0
    %2063 = vmatprep.subr.mxu0 0.0
    %2064 = vmatpush1.msra.mxu0 0.0
    %2065 = vmatprep.subr.mxu0 0.0
    %2066 = vmatpush1.msra.mxu0 0.0
    %2067 = vmatprep.subr.mxu0 0.0
    %2068 = vmatpush1.msra.mxu0 0.0
    %2069 = vmatprep.subr.mxu0 0.0
    %2070 = vmatpush1.msra.mxu0 0.0
    %2071 = vmatprep.subr.mxu0 0.0
    %2072 = vmatpush1.msra.mxu0 0.0
    %2073 = vmatprep.subr.mxu0 0.0
    %2074 = vmatpush1.msra.mxu0 0.0
    %2075 = vmatprep.subr.mxu0 0.0
    %2076 = vmatpush1.msra.mxu0 0.0
    %2077 = vmatprep.subr.mxu0 0.0
    %2078 = vmatpush1.msra.mxu0 0.0
    %2079 = vmatprep.subr.mxu0 0.0
    %2080 = vmatpush1.msra.mxu0 0.0
    %2081 = vmatprep.subr.mxu0 0.0
    %2082 = vmatpush1.msra.mxu0 0.0
    %2083 = vmatprep.subr.mxu0 0.0
    %2084 = vmatpush1.msra.mxu0 0.0
    %2085 = vmatprep.subr.mxu0 0.0
    %2086 = vmatpush1.msra.mxu0 %v1946
    %2087 = vmatprep.subr.mxu0 0.0
    %2088 = vmatpush1.msra.mxu0 %v1942
    %2089 = vmatprep.subr.mxu0 0.0
    %2090 = vmatpush2.msra.mxu0 0.0
    %2091 = vmatprep.subr.mxu0 0.0
    %2092 = vmatpush2.msra.mxu0 0.0
    %2093 = vmatprep.subr.mxu0 0.0
    %2094 = vmatpush2.msra.mxu0 0.0
    %2095 = vmatprep.subr.mxu0 0.0
    %2096 = vmatpush2.msra.mxu0 0.0
    %2097 = vmatprep.subr.mxu0 0.0
    %2098 = vmatpush2.msra.mxu0 0.0
    %2099 = vmatprep.subr.mxu0 0.0
    %2100 = vmatpush2.msra.mxu0 0.0
    %2101 = vmatprep.subr.mxu0 0.0
    %2102 = vmatpush2.msra.mxu0 0.0
    %2103 = vmatprep.subr.mxu0 0.0
    %2104 = vmatpush2.msra.mxu0 0.0
    %2105 = vmatprep.subr.mxu0 0.0
    %2106 = vmatpush2.msra.mxu0 0.0
    %2107 = vmatprep.subr.mxu0 0.0
    %2108 = vmatpush2.msra.mxu0 0.0
    %2109 = vmatprep.subr.mxu0 0.0
    %2110 = vmatpush2.msra.mxu0 0.0
    %2111 = vmatprep.subr.mxu0 0.0
    %2112 = vmatpush2.msra.mxu0 0.0
    %2113 = vmatprep.subr.mxu0 0.0
    %2114 = vmatpush2.msra.mxu0 0.0
    %2115 = vmatprep.subr.mxu0 0.0
    %2116 = vmatpush2.msra.mxu0 0.0
    %2117 = vmatprep.subr.mxu0 0.0
    %2118 = vmatpush2.msra.mxu0 0.0
    %2119 = vmatprep.subr.mxu0 0.0
    %2120 = vmatpush2.msra.mxu0 0.0
    %2121 = vmatprep.mubr.f32.mxu0 0.0
    %2122 = vmatmul.mubr.f32.gmra.mxu0 %v2052
    %v2123 = vpop.f32.mrf.mxu0
    %v2124 = vadd.f32 %v1944, %v2123
    %v2125 = vpop.f32.mrf.mxu0
    %2126 = vmatprep.mubr.f32.mxu0 0.0
    %2127 = vmatmul.mubr.f32.gmra.mxu0 %v2055
    %v2128 = vpop.f32.mrf.mxu0
    %v2129 = vadd.f32 %v1948, %v2128
    %v2130 = vpop.f32.mrf.mxu0
    %2131 = vdwg.mxu0
    %2132 = vmatprep.subr.mxu0 0.0
    %2133 = vmatpush1.xpose.msra.mxu0 0.0
    %2134 = vmatprep.subr.mxu0 0.0
    %2135 = vmatpush1.xpose.msra.mxu0 0.0
    %2136 = vmatprep.subr.mxu0 0.0
    %2137 = vmatpush1.xpose.msra.mxu0 0.0
    %2138 = vmatprep.subr.mxu0 0.0
    %2139 = vmatpush1.xpose.msra.mxu0 0.0
    %2140 = vmatprep.subr.mxu0 0.0
    %2141 = vmatpush1.xpose.msra.mxu0 0.0
    %2142 = vmatprep.subr.mxu0 0.0
    %2143 = vmatpush1.xpose.msra.mxu0 0.0
    %2144 = vmatprep.subr.mxu0 0.0
    %2145 = vmatpush1.xpose.msra.mxu0 0.0
    %2146 = vmatprep.subr.mxu0 0.0
    %2147 = vmatpush1.xpose.msra.mxu0 0.0
    %2148 = vmatprep.subr.mxu0 0.0
    %2149 = vmatpush1.xpose.msra.mxu0 0.0
    %2150 = vmatprep.subr.mxu0 0.0
    %2151 = vmatpush1.xpose.msra.mxu0 0.0
    %2152 = vmatprep.subr.mxu0 0.0
    %2153 = vmatpush1.xpose.msra.mxu0 0.0
    %2154 = vmatprep.subr.mxu0 0.0
    %2155 = vmatpush1.xpose.msra.mxu0 0.0
    %2156 = vmatprep.subr.mxu0 0.0
    %2157 = vmatpush1.xpose.msra.mxu0 0.0
    %2158 = vmatprep.subr.mxu0 0.0
    %2159 = vmatpush1.xpose.msra.mxu0 0.0
    %2160 = vmatprep.subr.mxu0 0.0
    %2161 = vmatpush1.xpose.msra.mxu0 %v905
    %2162 = vmatprep.subr.mxu0 0.0
    %2163 = vmatpush1.xpose.msra.mxu0 %v901
    %2164 = vmatprep.subr.mxu0 0.0
    %2165 = vmatpush2.xpose.msra.mxu0 0.0
    %2166 = vmatprep.subr.mxu0 0.0
    %2167 = vmatpush2.xpose.msra.mxu0 0.0
    %2168 = vmatprep.subr.mxu0 0.0
    %2169 = vmatpush2.xpose.msra.mxu0 0.0
    %2170 = vmatprep.subr.mxu0 0.0
    %2171 = vmatpush2.xpose.msra.mxu0 0.0
    %2172 = vmatprep.subr.mxu0 0.0
    %2173 = vmatpush2.xpose.msra.mxu0 0.0
    %2174 = vmatprep.subr.mxu0 0.0
    %2175 = vmatpush2.xpose.msra.mxu0 0.0
    %2176 = vmatprep.subr.mxu0 0.0
    %2177 = vmatpush2.xpose.msra.mxu0 0.0
    %2178 = vmatprep.subr.mxu0 0.0
    %2179 = vmatpush2.xpose.msra.mxu0 0.0
    %2180 = vmatprep.subr.mxu0 0.0
    %2181 = vmatpush2.xpose.msra.mxu0 0.0
    %2182 = vmatprep.subr.mxu0 0.0
    %2183 = vmatpush2.xpose.msra.mxu0 0.0
    %2184 = vmatprep.subr.mxu0 0.0
    %2185 = vmatpush2.xpose.msra.mxu0 0.0
    %2186 = vmatprep.subr.mxu0 0.0
    %2187 = vmatpush2.xpose.msra.mxu0 0.0
    %2188 = vmatprep.subr.mxu0 0.0
    %2189 = vmatpush2.xpose.msra.mxu0 0.0
    %2190 = vmatprep.subr.mxu0 0.0
    %2191 = vmatpush2.xpose.msra.mxu0 0.0
    %2192 = vmatprep.subr.mxu0 0.0
    %2193 = vmatpush2.xpose.msra.mxu0 0.0
    %2194 = vmatprep.subr.mxu0 0.0
    %2195 = vmatpush2.xpose.msra.mxu0 0.0
    %2196 = vmatprep.mubr.f32.mxu0 0.0
    %2197 = vmatmul.mubr.f32.gmra.mxu0 %v899
    %v2198 = vpop.f32.mrf.mxu0
    %v2199 = vadd.f32 0.0, %v2198
    %v2200 = vpop.f32.mrf.mxu0
    %2201 = vmatprep.mubr.f32.mxu0 0.0
    %2202 = vmatmul.mubr.f32.gmra.mxu0 %v903
    %v2203 = vpop.f32.mrf.mxu0
    %v2204 = vadd.f32 0.0, %v2203
    %v2205 = vpop.f32.mrf.mxu0
    %2206 = vdwg.mxu0
    %v2207 = vsel %vm1025, %v2199, -inf
    %2208 = vmax.xlane.f32.xlu0 %v2207
    %v2209 = vpop.xlane.xlu0 %2208
    %v2210 = vsel %vm1025, %v2204, -inf
    %2211 = vmax.xlane.f32.xlu0 %v2210
    %v2212 = vpop.xlane.xlu0 %2211
    %v2213 = vsub.f32 %v2199, %v2209
    %v2214 = vsub.f32 %v2204, %v2212
    %v2215 = vmul.f32 %v2213, 1.442695
    %v2216 = vpow.pop %v2215
    %v2217 = vmul.f32 %v2214, 1.442695
    %v2218 = vpow.pop %v2217
    %v2219 = vmul.f32 %v2216, %v60
    %v2220 = vmul.f32 %v2218, %v61
    %v2221 = vsel %vm1025, %v2219, 0.0
    %2222 = vadd.xlane.f32.xlu0 %v2221
    %v2223 = vpop.xlane.xlu0 %2222
    %v2224 = vsel %vm1025, %v2220, 0.0
    %2225 = vadd.xlane.f32.xlu0 %v2224
    %v2226 = vpop.xlane.xlu0 %2225
    %v2227 = vmax.f32 %v2223, 1e-16
    %v2228 = vmax.f32 %v2226, 1e-16
    %v2229 = vrcp.pop %v2227
    %v2230 = vrcp.pop %v2228
    %v2231 = vmul.f32 %v2219, %v2229
    %v2232 = vmul.f32 %v2220, %v2230
    %v2234 = vsel %vm1025, %v2231, 0
    %v2237 = vsel %vm1025, %v2232, 0
    %2239 = vmatprep.subr.mxu0 0.0
    %2240 = vmatpush1.msra.mxu0 0.0
    %2241 = vmatprep.subr.mxu0 0.0
    %2242 = vmatpush1.msra.mxu0 0.0
    %2243 = vmatprep.subr.mxu0 0.0
    %2244 = vmatpush1.msra.mxu0 0.0
    %2245 = vmatprep.subr.mxu0 0.0
    %2246 = vmatpush1.msra.mxu0 0.0
    %2247 = vmatprep.subr.mxu0 0.0
    %2248 = vmatpush1.msra.mxu0 0.0
    %2249 = vmatprep.subr.mxu0 0.0
    %2250 = vmatpush1.msra.mxu0 0.0
    %2251 = vmatprep.subr.mxu0 0.0
    %2252 = vmatpush1.msra.mxu0 0.0
    %2253 = vmatprep.subr.mxu0 0.0
    %2254 = vmatpush1.msra.mxu0 0.0
    %2255 = vmatprep.subr.mxu0 0.0
    %2256 = vmatpush1.msra.mxu0 0.0
    %2257 = vmatprep.subr.mxu0 0.0
    %2258 = vmatpush1.msra.mxu0 0.0
    %2259 = vmatprep.subr.mxu0 0.0
    %2260 = vmatpush1.msra.mxu0 0.0
    %2261 = vmatprep.subr.mxu0 0.0
    %2262 = vmatpush1.msra.mxu0 0.0
    %2263 = vmatprep.subr.mxu0 0.0
    %2264 = vmatpush1.msra.mxu0 0.0
    %2265 = vmatprep.subr.mxu0 0.0
    %2266 = vmatpush1.msra.mxu0 0.0
    %2267 = vmatprep.subr.mxu0 0.0
    %2268 = vmatpush1.msra.mxu0 %v946
    %2269 = vmatprep.subr.mxu0 0.0
    %2270 = vmatpush1.msra.mxu0 %v942
    %2271 = vmatprep.subr.mxu0 0.0
    %2272 = vmatpush2.msra.mxu0 0.0
    %2273 = vmatprep.subr.mxu0 0.0
    %2274 = vmatpush2.msra.mxu0 0.0
    %2275 = vmatprep.subr.mxu0 0.0
    %2276 = vmatpush2.msra.mxu0 0.0
    %2277 = vmatprep.subr.mxu0 0.0
    %2278 = vmatpush2.msra.mxu0 0.0
    %2279 = vmatprep.subr.mxu0 0.0
    %2280 = vmatpush2.msra.mxu0 0.0
    %2281 = vmatprep.subr.mxu0 0.0
    %2282 = vmatpush2.msra.mxu0 0.0
    %2283 = vmatprep.subr.mxu0 0.0
    %2284 = vmatpush2.msra.mxu0 0.0
    %2285 = vmatprep.subr.mxu0 0.0
    %2286 = vmatpush2.msra.mxu0 0.0
    %2287 = vmatprep.subr.mxu0 0.0
    %2288 = vmatpush2.msra.mxu0 0.0
    %2289 = vmatprep.subr.mxu0 0.0
    %2290 = vmatpush2.msra.mxu0 0.0
    %2291 = vmatprep.subr.mxu0 0.0
    %2292 = vmatpush2.msra.mxu0 0.0
    %2293 = vmatprep.subr.mxu0 0.0
    %2294 = vmatpush2.msra.mxu0 0.0
    %2295 = vmatprep.subr.mxu0 0.0
    %2296 = vmatpush2.msra.mxu0 0.0
    %2297 = vmatprep.subr.mxu0 0.0
    %2298 = vmatpush2.msra.mxu0 0.0
    %2299 = vmatprep.subr.mxu0 0.0
    %2300 = vmatpush2.msra.mxu0 0.0
    %2301 = vmatprep.subr.mxu0 0.0
    %2302 = vmatpush2.msra.mxu0 0.0
    %2303 = vmatprep.mubr.f32.mxu0 0.0
    %2304 = vmatmul.mubr.f32.gmra.mxu0 %v2234
    %v2305 = vpop.f32.mrf.mxu0
    %v2306 = vadd.f32 %v944, %v2305
    %v2307 = vpop.f32.mrf.mxu0
    %2308 = vmatprep.mubr.f32.mxu0 0.0
    %2309 = vmatmul.mubr.f32.gmra.mxu0 %v2237
    %v2310 = vpop.f32.mrf.mxu0
    %v2311 = vadd.f32 %v948, %v2310
    %v2312 = vpop.f32.mrf.mxu0
    %2313 = vdwg.mxu0
    %v2314 = vadd.f32 %v2124, %v2306
    %v2315 = vadd.f32 %v2129, %v2311
    %vm2316 = vcmask 261120
    %2317 = vst.msk [vmem:[#allocation8] sm:$0xff] %vm2316, %v2314
    %2318 = vst.msk [vmem:[#allocation8 + $0x8] sm:$0xff] %vm2316, %v2315
    // Predicated region
    $region26: #{gcn_encoder_forward.1} parent=1 // pred_check
      _
    $region27: #{gcn_encoder_forward.1} parent=1 // pred_check_branch
      %2320 = sbr.rel (0) target = $region29
    $region28: #{gcn_encoder_forward.1} parent=1 // pred_region
      %s2322 = ssub.s32 256, 256
      %2323 = vsyncadd [#allocation4], %s2322
      %s2324 = sshll.u32 [#allocation8], 4
      %s2325 = int_to_ptr.vmem [resolvable:$true] %s2324
      %2330 = dma.vmem_to_hbm [thread:$0]  %s2325, 256, %s3, [#allocation4], 128, 128, 8
    $region29: #{gcn_encoder_forward.1} parent=1 // pred_fallthru
      _
    // Predicated region
    $region30: #{gcn_encoder_forward.1} parent=1 // pred_check
      _
    $region31: #{gcn_encoder_forward.1} parent=1 // pred_check_branch
      %2332 = sbr.rel (0) target = $region33
    $region32: #{gcn_encoder_forward.1} parent=1 // pred_region
      %2333 = dma.done [#allocation4], 256
    $region33: #{gcn_encoder_forward.1} parent=1 // pred_fallthru
      _
    %2334 = vsyncpa [#allocation3], 1
    %2335 = vsyncpa [#allocation6], 1
    %2336 = vsyncpa [#allocation4], 1

</llo_original>
